<compile_context>
chip_gen: v7x
topology: tpu7x:2x2x1
jax: 0.10.0
libtpu: 0.0.40
codegen_flags: <defaults>
</compile_context>

<pallas_src>
import numpy as np
import jax
import jax.numpy as jnp
from jax import lax
from jax.experimental import pallas as pl
from jax.experimental.pallas import tpu as pltpu

_LEAKY_SLOPE = 0.01  # torch.nn.LeakyReLU default


def _conv_out(size, k, s):
    return (size - k) // s + 1


def _leaky_relu(x):
    return jnp.where(x >= 0.0, x, _LEAKY_SLOPE * x)


def _swish(x):
    # x * sigmoid(x); exp + approx reciprocal both go to the EUP slot.
    return x * pl.reciprocal(1.0 + jnp.exp(-x), approx=True)


# ----------------------------------------------------------------------------
# Single fused kernel: conv1 -> conv2 -> dense -> normalizer -> encoder -> head
# (convs are dense matmuls against Toeplitz-expanded weights, see init_params)
# ----------------------------------------------------------------------------
def _fused_actor_kernel(
        vis_ref, vec_ref, eps_ref,
        mean_ref, var_ref, steps_ref,
        wc1_ref, bc1_ref, wc2_ref, bc2_ref, wd_ref, bd_ref,
        w1v_ref, w1x_ref, bl1_ref, wl2_ref, bl2_ref, wl3_ref, bl3_ref,
        wmu_ref, bmu_ref, logsig_ref,
        act_ref):
    f32, bf16 = jnp.float32, jnp.bfloat16

    # ---- Conv1 (Cin -> 16, k=8, s=4) + LeakyReLU : one dense matmul ---------
    y1 = jnp.dot(vis_ref[...].astype(bf16), wc1_ref[...],
                 preferred_element_type=f32) + bc1_ref[...]
    y1 = _leaky_relu(y1)                       # (bt, OH1*OW1*16)  NHWC flatten

    # ---- Conv2 (16 -> 32, k=4, s=2) + LeakyReLU : one dense matmul ----------
    y2 = jnp.dot(y1.astype(bf16), wc2_ref[...],
                 preferred_element_type=f32) + bc2_ref[...]
    y2 = _leaky_relu(y2)                       # (bt, OH2*OW2*32)  NHWC flatten

    # ---- Visual dense (final_flat -> 256) + LeakyReLU -----------------------
    vis_feat = _leaky_relu(
        jnp.dot(y2.astype(bf16), wd_ref[...], preferred_element_type=f32)
        + bd_ref[...])

    # ---- Normalizer: clamp((x - mean) * rsqrt(var / steps), -5, 5) ----------
    steps = steps_ref[0, 0]                    # scalar from SMEM
    vec_n = (vec_ref[...] - mean_ref[...]) * lax.rsqrt(var_ref[...] / steps)
    vec_n = jnp.clip(vec_n, -5.0, 5.0)

    # ---- LinearEncoder: concat([vis, vec]) @ W1 == vis@W1v + vec@W1x --------
    h = (jnp.dot(vis_feat.astype(bf16), w1v_ref[...], preferred_element_type=f32)
         + jnp.dot(vec_n.astype(bf16), w1x_ref[...], preferred_element_type=f32)
         + bl1_ref[...])
    h = _swish(h)
    h = _swish(jnp.dot(h.astype(bf16), wl2_ref[...],
                       preferred_element_type=f32) + bl2_ref[...])
    h = _swish(jnp.dot(h.astype(bf16), wl3_ref[...],
                       preferred_element_type=f32) + bl3_ref[...])

    # ---- Gaussian head: action = mu + exp(log_sigma) * eps ------------------
    mu = jnp.dot(h.astype(bf16), wmu_ref[...],
                 preferred_element_type=f32) + bmu_ref[...]
    act_ref[...] = mu + jnp.exp(logsig_ref[...]) * eps_ref[...]


# ----------------------------------------------------------------------------
# Spec helpers
# ----------------------------------------------------------------------------
def _full_spec(arr):
    nd = arr.ndim
    return pl.BlockSpec(arr.shape, lambda i, _nd=nd: (0,) * _nd)


def _batch_spec(shape, bt):
    nd = len(shape)
    return pl.BlockSpec((bt,) + tuple(shape[1:]),
                        lambda i, _nd=nd: (i,) + (0,) * (_nd - 1))


# ----------------------------------------------------------------------------
# Host-side (one-time) conv -> dense Toeplitz expansion on the NHWC flatten.
# ----------------------------------------------------------------------------
def _expand_conv_weight(w_hwio, H, W, C, K, S, CO):
    """Valid strided conv as a dense matmul: (H*W*C) x (OH*OW*CO) matrix."""
    OH, OW = _conv_out(H, K, S), _conv_out(W, K, S)
    w = np.asarray(w_hwio, np.float32)                 # (K, K, C, CO)
    big = np.zeros((H * W * C, OH * OW * CO), np.float32)
    for i in range(OH):
        for j in range(OW):
            col = (i * OW + j) * CO
            for kh in range(K):
                h = i * S + kh
                for kw in range(K):
                    w_in = j * S + kw
                    row = (h * W + w_in) * C
                    big[row:row + C, col:col + CO] = w[kh, kw]
    return big


# ----------------------------------------------------------------------------
# Parameter init (synthetic; layouts documented against the torch module)
# ----------------------------------------------------------------------------
def init_params(key, height, width, channels, vec_dim, action_dim, h_size=256):
    ks = jax.random.split(key, 8)
    bf16 = jnp.bfloat16

    def he(k, fan_in, shape, gain=1.0):
        return (gain * jnp.sqrt(2.0 / fan_in)
                * jax.random.normal(k, shape, dtype=jnp.float32))

    K1, S1, CO1 = 8, 4, 16
    K2, S2, CO2 = 4, 2, 32
    oh1, ow1 = _conv_out(height, K1, S1), _conv_out(width, K1, S1)
    oh2, ow2 = _conv_out(oh1, K2, S2), _conv_out(ow1, K2, S2)
    final_flat = oh2 * ow2 * CO2
    enc_gain = (0.125 / h_size) ** 0.5  # LinearEncoder kernel_gain

    # Conv kernels generated directly in HWIO (kh, kw, Cin, Cout) order.
    # From a torch checkpoint (Cout, Cin, kh, kw): w.permute(2, 3, 1, 0).
    w_conv1 = he(ks[0], channels * K1 * K1, (K1, K1, channels, CO1))
    w_conv2 = he(ks[1], CO1 * K2 * K2, (K2, K2, CO1, CO2))
    b_conv1 = jnp.zeros((1, CO1), jnp.float32)
    b_conv2 = jnp.zeros((1, CO2), jnp.float32)

    # One-time host-side Toeplitz expansion: each valid strided conv becomes a
    # single dense matmul on the NHWC flatten (zeros where taps don't touch).
    wc1_big = jnp.asarray(
        _expand_conv_weight(w_conv1, height, width, channels, K1, S1, CO1)).astype(bf16)
    wc2_big = jnp.asarray(
        _expand_conv_weight(w_conv2, oh1, ow1, CO1, K2, S2, CO2)).astype(bf16)
    bc1_big = jnp.tile(b_conv1, (1, oh1 * ow1))        # per-channel bias tiled over positions
    bc2_big = jnp.tile(b_conv2, (1, oh2 * ow2))

    return {
        "w_conv1_big": wc1_big, "b_conv1_big": bc1_big,
        "w_conv2_big": wc2_big, "b_conv2_big": bc2_big,
        # Visual dense consumes the NHWC (h, w, c) flatten of conv2's output.
        # From torch (h_size, final_flat_NCHW):
        #   w_dense[(h*ow2 + w)*32 + c, :] = torch_w[:, c*oh2*ow2 + h*ow2 + w]
        "w_dense": he(ks[2], final_flat, (final_flat, h_size), gain=1.41).astype(bf16),
        "b_dense": jnp.zeros((1, h_size), jnp.float32),
        # Normalizer running stats (fresh: steps=1, mean=0, var=1).
        "norm_mean": jnp.zeros((1, vec_dim), jnp.float32),
        "norm_var": jnp.ones((1, vec_dim), jnp.float32),
        "norm_steps": jnp.ones((1, 1), jnp.float32),
        # LinearEncoder layer 1 split: concat([vis, vec]) @ W1 == vis@W1v + vec@W1x.
        "w_l1_vis": he(ks[3], h_size + vec_dim, (h_size, h_size), gain=enc_gain).astype(bf16),
        "w_l1_vec": he(ks[4], h_size + vec_dim, (vec_dim, h_size), gain=enc_gain).astype(bf16),
        "b_l1": jnp.zeros((1, h_size), jnp.float32),
        "w_l2": he(ks[5], h_size, (h_size, h_size), gain=enc_gain).astype(bf16),
        "b_l2": jnp.zeros((1, h_size), jnp.float32),
        "w_l3": he(ks[6], h_size, (h_size, h_size), gain=enc_gain).astype(bf16),
        "b_l3": jnp.zeros((1, h_size), jnp.float32),
        # GaussianDistribution mu head (256 -> action_dim), kernel_gain=0.2.
        "w_mu": he(ks[7], h_size, (h_size, action_dim), gain=0.2).astype(bf16),
        "b_mu": jnp.zeros((1, action_dim), jnp.float32),
        "log_sigma": jnp.zeros((1, action_dim), jnp.float32),
    }


# ----------------------------------------------------------------------------
# Wrapper: ActorStochasticPPO.forward(obs, deterministic=False) -> sampled action
# ----------------------------------------------------------------------------
def actor_forward(params, vis_obs_nhwc, vec_obs, eps, *, batch_tile=None):
    B, H, W, C = vis_obs_nhwc.shape
    A = eps.shape[1]

    bt = batch_tile if batch_tile is not None else min(B, 8)
    assert B % bt == 0, "batch must be divisible by the batch tile"
    nb = B // bt

    # Host-side layout prep only: contiguous NHWC flatten (free) + dtype casts.
    vis = vis_obs_nhwc.astype(jnp.float32).reshape(B, H * W * C)
    vec = vec_obs.astype(jnp.float32)
    eps = eps.astype(jnp.float32)

    weight_keys = ("w_conv1_big", "b_conv1_big", "w_conv2_big", "b_conv2_big",
                   "w_dense", "b_dense",
                   "w_l1_vis", "w_l1_vec", "b_l1", "w_l2", "b_l2", "w_l3", "b_l3",
                   "w_mu", "b_mu", "log_sigma")

    args = (vis, vec, eps,
            params["norm_mean"], params["norm_var"], params["norm_steps"],
            *(params[k] for k in weight_keys))

    in_specs = [
        _batch_spec(vis.shape, bt),
        _batch_spec(vec.shape, bt),
        _batch_spec(eps.shape, bt),
        _full_spec(params["norm_mean"]),
        _full_spec(params["norm_var"]),
        pl.BlockSpec(memory_space=pltpu.MemorySpace.SMEM),   # steps scalar -> SMEM
    ] + [_full_spec(params[k]) for k in weight_keys]

    return pl.pallas_call(
        _fused_actor_kernel,
        out_shape=jax.ShapeDtypeStruct((B, A), jnp.float32),
        grid=(nb,),
        in_specs=in_specs,
        out_specs=pl.BlockSpec((bt, A), lambda i: (i, 0)),
        compiler_params=pltpu.CompilerParams(
            dimension_semantics=("parallel",)),   # shard batch across v7x's 2 TCs
    )(*args)


if __name__ == "__main__":
    # gridsensor3 = (H, W, C) = (20, 20, 4) (smallest round spatial size valid
    # for the k8s4 -> k4s2 stack), vector_obs dim = 8, action_dim = 3, batch = 2.
    B, H, W, C = 2, 20, 20, 4
    VEC, ACT = 8, 3

    key = jax.random.PRNGKey(0)
    k_params, k_vis, k_vec, k_eps = jax.random.split(key, 4)

    params = init_params(k_params, H, W, C, VEC, ACT)
    vis_obs = jax.random.uniform(k_vis, (B, H, W, C), dtype=jnp.float32)   # NHWC
    vec_obs = jax.random.normal(k_vec, (B, VEC), dtype=jnp.float32)
    eps = jax.random.normal(k_eps, (B, ACT), dtype=jnp.float32)            # dist.sample() noise
    # TODO(synk): Normalizer.update() (running-stat mutation) is training-time
    # state, not part of the forward pass, so it is not implemented here.

    action = jax.jit(actor_forward)(params, vis_obs, vec_obs, eps)
    jax.block_until_ready(action)
    assert action.shape == (B, ACT) and action.dtype == jnp.float32
    assert bool(jnp.all(jnp.isfinite(action)))
    print("KERNEL_OK")
</pallas_src>

<mosaic_0001>
module attributes {stable_mosaic.version = 11 : i64} {
  func.func @_fused_actor_kernel(%arg0: i32, %arg1: memref<2x1600xf32, #tpu.memory_space<vmem>>, %arg2: memref<2x8xf32, #tpu.memory_space<vmem>>, %arg3: memref<2x3xf32, #tpu.memory_space<vmem>>, %arg4: memref<1x8xf32, #tpu.memory_space<vmem>>, %arg5: memref<1x8xf32, #tpu.memory_space<vmem>>, %arg6: memref<1x1xf32, #tpu.memory_space<smem>>, %arg7: memref<1600x256xbf16, #tpu.memory_space<vmem>>, %arg8: memref<1x256xf32, #tpu.memory_space<vmem>>, %arg9: memref<256x32xbf16, #tpu.memory_space<vmem>>, %arg10: memref<1x32xf32, #tpu.memory_space<vmem>>, %arg11: memref<32x256xbf16, #tpu.memory_space<vmem>>, %arg12: memref<1x256xf32, #tpu.memory_space<vmem>>, %arg13: memref<256x256xbf16, #tpu.memory_space<vmem>>, %arg14: memref<8x256xbf16, #tpu.memory_space<vmem>>, %arg15: memref<1x256xf32, #tpu.memory_space<vmem>>, %arg16: memref<256x256xbf16, #tpu.memory_space<vmem>>, %arg17: memref<1x256xf32, #tpu.memory_space<vmem>>, %arg18: memref<256x256xbf16, #tpu.memory_space<vmem>>, %arg19: memref<1x256xf32, #tpu.memory_space<vmem>>, %arg20: memref<256x3xbf16, #tpu.memory_space<vmem>>, %arg21: memref<1x3xf32, #tpu.memory_space<vmem>>, %arg22: memref<1x3xf32, #tpu.memory_space<vmem>>, %arg23: memref<2x3xf32, #tpu.memory_space<vmem>>) attributes {dimension_semantics = [#tpu.dimension_semantics<parallel>], iteration_bounds = array<i64: 1>, scalar_prefetch = 0 : i64, scratch_operands = 0 : i64, tpu.core_type = #tpu.core_type<tc>, window_params = [{transform_indices = @transform_0, window_bounds = array<i64: 2, 1600>}, {transform_indices = @transform_1, window_bounds = array<i64: 2, 8>}, {transform_indices = @transform_2, window_bounds = array<i64: 2, 3>}, {pipeline_mode = #tpu.pipeline_mode<synchronous>, transform_indices = @transform_3, window_bounds = array<i64: 1, 8>}, {pipeline_mode = #tpu.pipeline_mode<synchronous>, transform_indices = @transform_4, window_bounds = array<i64: 1, 8>}, {transform_indices = @transform_5, window_bounds = array<i64: 1, 1>}, {pipeline_mode = #tpu.pipeline_mode<synchronous>, transform_indices = @transform_6, window_bounds = array<i64: 1600, 256>}, {pipeline_mode = #tpu.pipeline_mode<synchronous>, transform_indices = @transform_7, window_bounds = array<i64: 1, 256>}, {pipeline_mode = #tpu.pipeline_mode<synchronous>, transform_indices = @transform_8, window_bounds = array<i64: 256, 32>}, {pipeline_mode = #tpu.pipeline_mode<synchronous>, transform_indices = @transform_9, window_bounds = array<i64: 1, 32>}, {pipeline_mode = #tpu.pipeline_mode<synchronous>, transform_indices = @transform_10, window_bounds = array<i64: 32, 256>}, {pipeline_mode = #tpu.pipeline_mode<synchronous>, transform_indices = @transform_11, window_bounds = array<i64: 1, 256>}, {pipeline_mode = #tpu.pipeline_mode<synchronous>, transform_indices = @transform_12, window_bounds = array<i64: 256, 256>}, {pipeline_mode = #tpu.pipeline_mode<synchronous>, transform_indices = @transform_13, window_bounds = array<i64: 8, 256>}, {pipeline_mode = #tpu.pipeline_mode<synchronous>, transform_indices = @transform_14, window_bounds = array<i64: 1, 256>}, {pipeline_mode = #tpu.pipeline_mode<synchronous>, transform_indices = @transform_15, window_bounds = array<i64: 256, 256>}, {pipeline_mode = #tpu.pipeline_mode<synchronous>, transform_indices = @transform_16, window_bounds = array<i64: 1, 256>}, {pipeline_mode = #tpu.pipeline_mode<synchronous>, transform_indices = @transform_17, window_bounds = array<i64: 256, 256>}, {pipeline_mode = #tpu.pipeline_mode<synchronous>, transform_indices = @transform_18, window_bounds = array<i64: 1, 256>}, {pipeline_mode = #tpu.pipeline_mode<synchronous>, transform_indices = @transform_19, window_bounds = array<i64: 256, 3>}, {pipeline_mode = #tpu.pipeline_mode<synchronous>, transform_indices = @transform_20, window_bounds = array<i64: 1, 3>}, {pipeline_mode = #tpu.pipeline_mode<synchronous>, transform_indices = @transform_21, window_bounds = array<i64: 1, 3>}, {transform_indices = @transform_22, window_bounds = array<i64: 2, 3>}]} {
    %c0 = arith.constant 0 : index
    %c0_0 = arith.constant 0 : index
    %0 = vector.load %arg1[%c0, %c0_0] : memref<2x1600xf32, #tpu.memory_space<vmem>>, vector<2x1600xf32>
    %1 = arith.truncf %0 : vector<2x1600xf32> to vector<2x1600xbf16>
    %c0_1 = arith.constant 0 : index
    %c0_2 = arith.constant 0 : index
    %2 = vector.load %arg7[%c0_1, %c0_2] : memref<1600x256xbf16, #tpu.memory_space<vmem>>, vector<1600x256xbf16>
    %cst = arith.constant dense<0.000000e+00> : vector<2x256xf32>
    %3 = tpu.matmul %1, %2, %cst {dimension_numbers = #tpu.dot_dimension_numbers<[1], [0], [0], [1], [0, 0, 1, 1], [], []>} : vector<2x1600xbf16>, vector<1600x256xbf16>, vector<2x256xf32> -> vector<2x256xf32>
    %c0_3 = arith.constant 0 : index
    %c0_4 = arith.constant 0 : index
    %4 = vector.load %arg8[%c0_3, %c0_4] : memref<1x256xf32, #tpu.memory_space<vmem>>, vector<1x256xf32>
    %5 = vector.broadcast %4 : vector<1x256xf32> to vector<2x256xf32>
    %6 = arith.addf %3, %5 : vector<2x256xf32>
    %cst_5 = arith.constant 0.000000e+00 : f32
    %7 = vector.broadcast %cst_5 : f32 to vector<2x256xf32>
    %8 = arith.cmpf oge, %6, %7 : vector<2x256xf32>
    %cst_6 = arith.constant 0.00999999977 : f32
    %9 = vector.broadcast %cst_6 : f32 to vector<2x256xf32>
    %10 = arith.mulf %9, %6 : vector<2x256xf32>
    %11 = arith.select %8, %6, %10 : vector<2x256xi1>, vector<2x256xf32>
    %12 = arith.truncf %11 : vector<2x256xf32> to vector<2x256xbf16>
    %c0_7 = arith.constant 0 : index
    %c0_8 = arith.constant 0 : index
    %13 = vector.load %arg9[%c0_7, %c0_8] : memref<256x32xbf16, #tpu.memory_space<vmem>>, vector<256x32xbf16>
    %cst_9 = arith.constant dense<0.000000e+00> : vector<2x32xf32>
    %14 = tpu.matmul %12, %13, %cst_9 {dimension_numbers = #tpu.dot_dimension_numbers<[1], [0], [0], [1], [0, 0, 1, 1], [], []>} : vector<2x256xbf16>, vector<256x32xbf16>, vector<2x32xf32> -> vector<2x32xf32>
    %c0_10 = arith.constant 0 : index
    %c0_11 = arith.constant 0 : index
    %15 = vector.load %arg10[%c0_10, %c0_11] : memref<1x32xf32, #tpu.memory_space<vmem>>, vector<1x32xf32>
    %16 = vector.broadcast %15 : vector<1x32xf32> to vector<2x32xf32>
    %17 = arith.addf %14, %16 : vector<2x32xf32>
    %cst_12 = arith.constant 0.000000e+00 : f32
    %18 = vector.broadcast %cst_12 : f32 to vector<2x32xf32>
    %19 = arith.cmpf oge, %17, %18 : vector<2x32xf32>
    %cst_13 = arith.constant 0.00999999977 : f32
    %20 = vector.broadcast %cst_13 : f32 to vector<2x32xf32>
    %21 = arith.mulf %20, %17 : vector<2x32xf32>
    %22 = arith.select %19, %17, %21 : vector<2x32xi1>, vector<2x32xf32>
    %23 = arith.truncf %22 : vector<2x32xf32> to vector<2x32xbf16>
    %c0_14 = arith.constant 0 : index
    %c0_15 = arith.constant 0 : index
    %24 = vector.load %arg11[%c0_14, %c0_15] : memref<32x256xbf16, #tpu.memory_space<vmem>>, vector<32x256xbf16>
    %cst_16 = arith.constant dense<0.000000e+00> : vector<2x256xf32>
    %25 = tpu.matmul %23, %24, %cst_16 {dimension_numbers = #tpu.dot_dimension_numbers<[1], [0], [0], [1], [0, 0, 1, 1], [], []>} : vector<2x32xbf16>, vector<32x256xbf16>, vector<2x256xf32> -> vector<2x256xf32>
    %c0_17 = arith.constant 0 : index
    %c0_18 = arith.constant 0 : index
    %26 = vector.load %arg12[%c0_17, %c0_18] : memref<1x256xf32, #tpu.memory_space<vmem>>, vector<1x256xf32>
    %27 = vector.broadcast %26 : vector<1x256xf32> to vector<2x256xf32>
    %28 = arith.addf %25, %27 : vector<2x256xf32>
    %cst_19 = arith.constant 0.000000e+00 : f32
    %29 = vector.broadcast %cst_19 : f32 to vector<2x256xf32>
    %30 = arith.cmpf oge, %28, %29 : vector<2x256xf32>
    %cst_20 = arith.constant 0.00999999977 : f32
    %31 = vector.broadcast %cst_20 : f32 to vector<2x256xf32>
    %32 = arith.mulf %31, %28 : vector<2x256xf32>
    %33 = arith.select %30, %28, %32 : vector<2x256xi1>, vector<2x256xf32>
    %c0_21 = arith.constant 0 : index
    %c0_22 = arith.constant 0 : index
    %34 = memref.load %arg6[%c0_21, %c0_22] : memref<1x1xf32, #tpu.memory_space<smem>>
    %c0_23 = arith.constant 0 : index
    %c0_24 = arith.constant 0 : index
    %35 = vector.load %arg2[%c0_23, %c0_24] : memref<2x8xf32, #tpu.memory_space<vmem>>, vector<2x8xf32>
    %c0_25 = arith.constant 0 : index
    %c0_26 = arith.constant 0 : index
    %36 = vector.load %arg4[%c0_25, %c0_26] : memref<1x8xf32, #tpu.memory_space<vmem>>, vector<1x8xf32>
    %37 = vector.broadcast %36 : vector<1x8xf32> to vector<2x8xf32>
    %38 = arith.subf %35, %37 : vector<2x8xf32>
    %c0_27 = arith.constant 0 : index
    %c0_28 = arith.constant 0 : index
    %39 = vector.load %arg5[%c0_27, %c0_28] : memref<1x8xf32, #tpu.memory_space<vmem>>, vector<1x8xf32>
    %40 = vector.broadcast %34 : f32 to vector<1x8xf32>
    %41 = arith.divf %39, %40 : vector<1x8xf32>
    %42 = math.rsqrt %41 : vector<1x8xf32>
    %43 = vector.broadcast %42 : vector<1x8xf32> to vector<2x8xf32>
    %44 = arith.mulf %38, %43 : vector<2x8xf32>
    %cst_29 = arith.constant -5.000000e+00 : f32
    %cst_30 = arith.constant 5.000000e+00 : f32
    %45 = vector.broadcast %cst_29 : f32 to vector<2x8xf32>
    %46 = arith.maximumf %45, %44 : vector<2x8xf32>
    %47 = vector.broadcast %cst_30 : f32 to vector<2x8xf32>
    %48 = arith.minimumf %47, %46 : vector<2x8xf32>
    %49 = arith.truncf %33 : vector<2x256xf32> to vector<2x256xbf16>
    %c0_31 = arith.constant 0 : index
    %c0_32 = arith.constant 0 : index
    %50 = vector.load %arg13[%c0_31, %c0_32] : memref<256x256xbf16, #tpu.memory_space<vmem>>, vector<256x256xbf16>
    %cst_33 = arith.constant dense<0.000000e+00> : vector<2x256xf32>
    %51 = tpu.matmul %49, %50, %cst_33 {dimension_numbers = #tpu.dot_dimension_numbers<[1], [0], [0], [1], [0, 0, 1, 1], [], []>} : vector<2x256xbf16>, vector<256x256xbf16>, vector<2x256xf32> -> vector<2x256xf32>
    %52 = arith.truncf %48 : vector<2x8xf32> to vector<2x8xbf16>
    %c0_34 = arith.constant 0 : index
    %c0_35 = arith.constant 0 : index
    %53 = vector.load %arg14[%c0_34, %c0_35] : memref<8x256xbf16, #tpu.memory_space<vmem>>, vector<8x256xbf16>
    %cst_36 = arith.constant dense<0.000000e+00> : vector<2x256xf32>
    %54 = tpu.matmul %52, %53, %cst_36 {dimension_numbers = #tpu.dot_dimension_numbers<[1], [0], [0], [1], [0, 0, 1, 1], [], []>} : vector<2x8xbf16>, vector<8x256xbf16>, vector<2x256xf32> -> vector<2x256xf32>
    %55 = arith.addf %51, %54 : vector<2x256xf32>
    %c0_37 = arith.constant 0 : index
    %c0_38 = arith.constant 0 : index
    %56 = vector.load %arg15[%c0_37, %c0_38] : memref<1x256xf32, #tpu.memory_space<vmem>>, vector<1x256xf32>
    %57 = vector.broadcast %56 : vector<1x256xf32> to vector<2x256xf32>
    %58 = arith.addf %55, %57 : vector<2x256xf32>
    %cst_39 = arith.constant 0.000000e+00 : f32
    %59 = vector.broadcast %cst_39 : f32 to vector<2x256xf32>
    %60 = arith.subf %59, %58 : vector<2x256xf32>
    %61 = math.exp %60 : vector<2x256xf32>
    %cst_40 = arith.constant 1.000000e+00 : f32
    %62 = vector.broadcast %cst_40 : f32 to vector<2x256xf32>
    %63 = arith.addf %62, %61 : vector<2x256xf32>
    %64 = tpu.reciprocal %63 {approx = true} : vector<2x256xf32> -> vector<2x256xf32>
    %65 = arith.mulf %58, %64 : vector<2x256xf32>
    %66 = arith.truncf %65 : vector<2x256xf32> to vector<2x256xbf16>
    %c0_41 = arith.constant 0 : index
    %c0_42 = arith.constant 0 : index
    %67 = vector.load %arg16[%c0_41, %c0_42] : memref<256x256xbf16, #tpu.memory_space<vmem>>, vector<256x256xbf16>
    %cst_43 = arith.constant dense<0.000000e+00> : vector<2x256xf32>
    %68 = tpu.matmul %66, %67, %cst_43 {dimension_numbers = #tpu.dot_dimension_numbers<[1], [0], [0], [1], [0, 0, 1, 1], [], []>} : vector<2x256xbf16>, vector<256x256xbf16>, vector<2x256xf32> -> vector<2x256xf32>
    %c0_44 = arith.constant 0 : index
    %c0_45 = arith.constant 0 : index
    %69 = vector.load %arg17[%c0_44, %c0_45] : memref<1x256xf32, #tpu.memory_space<vmem>>, vector<1x256xf32>
    %70 = vector.broadcast %69 : vector<1x256xf32> to vector<2x256xf32>
    %71 = arith.addf %68, %70 : vector<2x256xf32>
    %cst_46 = arith.constant 0.000000e+00 : f32
    %72 = vector.broadcast %cst_46 : f32 to vector<2x256xf32>
    %73 = arith.subf %72, %71 : vector<2x256xf32>
    %74 = math.exp %73 : vector<2x256xf32>
    %cst_47 = arith.constant 1.000000e+00 : f32
    %75 = vector.broadcast %cst_47 : f32 to vector<2x256xf32>
    %76 = arith.addf %75, %74 : vector<2x256xf32>
    %77 = tpu.reciprocal %76 {approx = true} : vector<2x256xf32> -> vector<2x256xf32>
    %78 = arith.mulf %71, %77 : vector<2x256xf32>
    %79 = arith.truncf %78 : vector<2x256xf32> to vector<2x256xbf16>
    %c0_48 = arith.constant 0 : index
    %c0_49 = arith.constant 0 : index
    %80 = vector.load %arg18[%c0_48, %c0_49] : memref<256x256xbf16, #tpu.memory_space<vmem>>, vector<256x256xbf16>
    %cst_50 = arith.constant dense<0.000000e+00> : vector<2x256xf32>
    %81 = tpu.matmul %79, %80, %cst_50 {dimension_numbers = #tpu.dot_dimension_numbers<[1], [0], [0], [1], [0, 0, 1, 1], [], []>} : vector<2x256xbf16>, vector<256x256xbf16>, vector<2x256xf32> -> vector<2x256xf32>
    %c0_51 = arith.constant 0 : index
    %c0_52 = arith.constant 0 : index
    %82 = vector.load %arg19[%c0_51, %c0_52] : memref<1x256xf32, #tpu.memory_space<vmem>>, vector<1x256xf32>
    %83 = vector.broadcast %82 : vector<1x256xf32> to vector<2x256xf32>
    %84 = arith.addf %81, %83 : vector<2x256xf32>
    %cst_53 = arith.constant 0.000000e+00 : f32
    %85 = vector.broadcast %cst_53 : f32 to vector<2x256xf32>
    %86 = arith.subf %85, %84 : vector<2x256xf32>
    %87 = math.exp %86 : vector<2x256xf32>
    %cst_54 = arith.constant 1.000000e+00 : f32
    %88 = vector.broadcast %cst_54 : f32 to vector<2x256xf32>
    %89 = arith.addf %88, %87 : vector<2x256xf32>
    %90 = tpu.reciprocal %89 {approx = true} : vector<2x256xf32> -> vector<2x256xf32>
    %91 = arith.mulf %84, %90 : vector<2x256xf32>
    %92 = arith.truncf %91 : vector<2x256xf32> to vector<2x256xbf16>
    %c0_55 = arith.constant 0 : index
    %c0_56 = arith.constant 0 : index
    %93 = vector.load %arg20[%c0_55, %c0_56] : memref<256x3xbf16, #tpu.memory_space<vmem>>, vector<256x3xbf16>
    %cst_57 = arith.constant dense<0.000000e+00> : vector<2x3xf32>
    %94 = tpu.matmul %92, %93, %cst_57 {dimension_numbers = #tpu.dot_dimension_numbers<[1], [0], [0], [1], [0, 0, 1, 1], [], []>} : vector<2x256xbf16>, vector<256x3xbf16>, vector<2x3xf32> -> vector<2x3xf32>
    %c0_58 = arith.constant 0 : index
    %c0_59 = arith.constant 0 : index
    %95 = vector.load %arg21[%c0_58, %c0_59] : memref<1x3xf32, #tpu.memory_space<vmem>>, vector<1x3xf32>
    %96 = vector.broadcast %95 : vector<1x3xf32> to vector<2x3xf32>
    %97 = arith.addf %94, %96 : vector<2x3xf32>
    %c0_60 = arith.constant 0 : index
    %c0_61 = arith.constant 0 : index
    %98 = vector.load %arg22[%c0_60, %c0_61] : memref<1x3xf32, #tpu.memory_space<vmem>>, vector<1x3xf32>
    %99 = math.exp %98 : vector<1x3xf32>
    %c0_62 = arith.constant 0 : index
    %c0_63 = arith.constant 0 : index
    %100 = vector.load %arg3[%c0_62, %c0_63] : memref<2x3xf32, #tpu.memory_space<vmem>>, vector<2x3xf32>
    %101 = vector.broadcast %99 : vector<1x3xf32> to vector<2x3xf32>
    %102 = arith.mulf %101, %100 : vector<2x3xf32>
    %103 = arith.addf %97, %102 : vector<2x3xf32>
    %c0_64 = arith.constant 0 : index
    %c0_65 = arith.constant 0 : index
    %104 = vector.load %arg23[%c0_64, %c0_65] : memref<2x3xf32, #tpu.memory_space<vmem>>, vector<2x3xf32>
    tpu.vector_store %arg23[%c0_64, %c0_65], %103 {strides = array<i32>} : memref<2x3xf32, #tpu.memory_space<vmem>>, vector<2x3xf32>,
    return
  }
  func.func @transform_0(%arg0: i32) -> (i32, i32) {
    %c0_i32 = arith.constant 0 : i32
    %c0_i32_0 = arith.constant 0 : i32
    return %arg0, %c0_i32 : i32, i32
  }
  func.func @transform_1(%arg0: i32) -> (i32, i32) {
    %c0_i32 = arith.constant 0 : i32
    %c0_i32_0 = arith.constant 0 : i32
    return %arg0, %c0_i32 : i32, i32
  }
  func.func @transform_2(%arg0: i32) -> (i32, i32) {
    %c0_i32 = arith.constant 0 : i32
    %c0_i32_0 = arith.constant 0 : i32
    return %arg0, %c0_i32 : i32, i32
  }
  func.func @transform_3(%arg0: i32) -> (i32, i32) {
    %c0_i32 = arith.constant 0 : i32
    %c0_i32_0 = arith.constant 0 : i32
    %c0_i32_1 = arith.constant 0 : i32
    return %c0_i32, %c0_i32_0 : i32, i32
  }
  func.func @transform_4(%arg0: i32) -> (i32, i32) {
    %c0_i32 = arith.constant 0 : i32
    %c0_i32_0 = arith.constant 0 : i32
    %c0_i32_1 = arith.constant 0 : i32
    return %c0_i32, %c0_i32_0 : i32, i32
  }
  func.func @transform_5(%arg0: i32) -> (i32, i32) {
    %c0_i32 = arith.constant 0 : i32
    %c0_i32_0 = arith.constant 0 : i32
    %c0_i32_1 = arith.constant 0 : i32
    return %c0_i32, %c0_i32_0 : i32, i32
  }
  func.func @transform_6(%arg0: i32) -> (i32, i32) {
    %c0_i32 = arith.constant 0 : i32
    %c0_i32_0 = arith.constant 0 : i32
    %c0_i32_1 = arith.constant 0 : i32
    return %c0_i32, %c0_i32_0 : i32, i32
  }
  func.func @transform_7(%arg0: i32) -> (i32, i32) {
    %c0_i32 = arith.constant 0 : i32
    %c0_i32_0 = arith.constant 0 : i32
    %c0_i32_1 = arith.constant 0 : i32
    return %c0_i32, %c0_i32_0 : i32, i32
  }
  func.func @transform_8(%arg0: i32) -> (i32, i32) {
    %c0_i32 = arith.constant 0 : i32
    %c0_i32_0 = arith.constant 0 : i32
    %c0_i32_1 = arith.constant 0 : i32
    return %c0_i32, %c0_i32_0 : i32, i32
  }
  func.func @transform_9(%arg0: i32) -> (i32, i32) {
    %c0_i32 = arith.constant 0 : i32
    %c0_i32_0 = arith.constant 0 : i32
    %c0_i32_1 = arith.constant 0 : i32
    return %c0_i32, %c0_i32_0 : i32, i32
  }
  func.func @transform_10(%arg0: i32) -> (i32, i32) {
    %c0_i32 = arith.constant 0 : i32
    %c0_i32_0 = arith.constant 0 : i32
    %c0_i32_1 = arith.constant 0 : i32
    return %c0_i32, %c0_i32_0 : i32, i32
  }
  func.func @transform_11(%arg0: i32) -> (i32, i32) {
    %c0_i32 = arith.constant 0 : i32
    %c0_i32_0 = arith.constant 0 : i32
    %c0_i32_1 = arith.constant 0 : i32
    return %c0_i32, %c0_i32_0 : i32, i32
  }
  func.func @transform_12(%arg0: i32) -> (i32, i32) {
    %c0_i32 = arith.constant 0 : i32
    %c0_i32_0 = arith.constant 0 : i32
    %c0_i32_1 = arith.constant 0 : i32
    return %c0_i32, %c0_i32_0 : i32, i32
  }
  func.func @transform_13(%arg0: i32) -> (i32, i32) {
    %c0_i32 = arith.constant 0 : i32
    %c0_i32_0 = arith.constant 0 : i32
    %c0_i32_1 = arith.constant 0 : i32
    return %c0_i32, %c0_i32_0 : i32, i32
  }
  func.func @transform_14(%arg0: i32) -> (i32, i32) {
    %c0_i32 = arith.constant 0 : i32
    %c0_i32_0 = arith.constant 0 : i32
    %c0_i32_1 = arith.constant 0 : i32
    return %c0_i32, %c0_i32_0 : i32, i32
  }
  func.func @transform_15(%arg0: i32) -> (i32, i32) {
    %c0_i32 = arith.constant 0 : i32
    %c0_i32_0 = arith.constant 0 : i32
    %c0_i32_1 = arith.constant 0 : i32
    return %c0_i32, %c0_i32_0 : i32, i32
  }
  func.func @transform_16(%arg0: i32) -> (i32, i32) {
    %c0_i32 = arith.constant 0 : i32
    %c0_i32_0 = arith.constant 0 : i32
    %c0_i32_1 = arith.constant 0 : i32
    return %c0_i32, %c0_i32_0 : i32, i32
  }
  func.func @transform_17(%arg0: i32) -> (i32, i32) {
    %c0_i32 = arith.constant 0 : i32
    %c0_i32_0 = arith.constant 0 : i32
    %c0_i32_1 = arith.constant 0 : i32
    return %c0_i32, %c0_i32_0 : i32, i32
  }
  func.func @transform_18(%arg0: i32) -> (i32, i32) {
    %c0_i32 = arith.constant 0 : i32
    %c0_i32_0 = arith.constant 0 : i32
    %c0_i32_1 = arith.constant 0 : i32
    return %c0_i32, %c0_i32_0 : i32, i32
  }
  func.func @transform_19(%arg0: i32) -> (i32, i32) {
    %c0_i32 = arith.constant 0 : i32
    %c0_i32_0 = arith.constant 0 : i32
    %c0_i32_1 = arith.constant 0 : i32
    return %c0_i32, %c0_i32_0 : i32, i32
  }
  func.func @transform_20(%arg0: i32) -> (i32, i32) {
    %c0_i32 = arith.constant 0 : i32
    %c0_i32_0 = arith.constant 0 : i32
    %c0_i32_1 = arith.constant 0 : i32
    return %c0_i32, %c0_i32_0 : i32, i32
  }
  func.func @transform_21(%arg0: i32) -> (i32, i32) {
    %c0_i32 = arith.constant 0 : i32
    %c0_i32_0 = arith.constant 0 : i32
    %c0_i32_1 = arith.constant 0 : i32
    return %c0_i32, %c0_i32_0 : i32, i32
  }
  func.func @transform_22(%arg0: i32) -> (i32, i32) {
    %c0_i32 = arith.constant 0 : i32
    %c0_i32_0 = arith.constant 0 : i32
    return %arg0, %c0_i32 : i32, i32
  }
}

</mosaic_0001>

<llo_original>
// kernel: actor_forward.1
$region0: #{actor_forward.1}
  #allocation0 [shape = 'u32[]', space=smem, size = 0x4, offset = 0x4, fixed_abs, tag = 'smem constant byte address 0x4 - core index']
  #allocation1 [shape = 'u32[144,128]{1,0:T(1,128)}', space=vmem, size = 0x12000, scoped, tag = 'internal scratch']
  #allocation2 [shape = 'f32[1,1]{1,0:T(1,128)S(6)}', space=smem, size = 0x200, scoped, tag = 'scoped memory for actor_forward.1']
  %s0 = inlined_call_operand.vmem [shape: f32[2,1600], index: 0, kind: input, shape index: {}]
  %s1 = inlined_call_operand.vmem [shape: f32[2,8], index: 1, kind: input, shape index: {}]
  %s2 = inlined_call_operand.vmem [shape: f32[2,3], index: 2, kind: input, shape index: {}]
  %s3 = inlined_call_operand.vmem [shape: f32[1,8], index: 3, kind: input, shape index: {}]
  %s4 = inlined_call_operand.hbm [shape: f32[1,8], index: 4, kind: input, shape index: {}]
  %s5 = inlined_call_operand.<no memory space> [shape: f32[1,1], index: 5, kind: input, shape index: {}]
  %s6 = inlined_call_operand.vmem [shape: bf16[1600,256], index: 6, kind: input, shape index: {}]
  %s7 = inlined_call_operand.vmem [shape: f32[1,256], index: 7, kind: input, shape index: {}]
  %s8 = inlined_call_operand.vmem [shape: bf16[256,32], index: 8, kind: input, shape index: {}]
  %s9 = inlined_call_operand.vmem [shape: f32[1,32], index: 9, kind: input, shape index: {}]
  %s10 = inlined_call_operand.vmem [shape: bf16[32,256], index: 10, kind: input, shape index: {}]
  %s11 = inlined_call_operand.vmem [shape: f32[1,256], index: 11, kind: input, shape index: {}]
  %s12 = inlined_call_operand.vmem [shape: bf16[256,256], index: 12, kind: input, shape index: {}]
  %s13 = inlined_call_operand.vmem [shape: bf16[8,256], index: 13, kind: input, shape index: {}]
  %s14 = inlined_call_operand.hbm [shape: f32[1,256], index: 14, kind: input, shape index: {}]
  %s15 = inlined_call_operand.vmem [shape: bf16[256,256], index: 15, kind: input, shape index: {}]
  %s16 = inlined_call_operand.hbm [shape: f32[1,256], index: 16, kind: input, shape index: {}]
  %s17 = inlined_call_operand.vmem [shape: bf16[256,256], index: 17, kind: input, shape index: {}]
  %s18 = inlined_call_operand.hbm [shape: f32[1,256], index: 18, kind: input, shape index: {}]
  %s19 = inlined_call_operand.vmem [shape: bf16[256,3], index: 19, kind: input, shape index: {}]
  %s20 = inlined_call_operand.hbm [shape: f32[1,3], index: 20, kind: input, shape index: {}]
  %s21 = inlined_call_operand.hbm [shape: f32[1,3], index: 21, kind: input, shape index: {}]
  %s22 = inlined_call_operand.hbm [shape: f32[2,3], index: 22, kind: output, shape index: {}]
  %s23 = sld [smem:[#allocation0]]
  $region122: #{actor_forward.1} parent=0
    _
  %s25 = ssub.s32 1, %s23
  %s26 = scalar_select 0, %s25, %s23
  %27 = sst [smem:[#allocation2]] %s5
  $region1: #{actor_forward.1} parent=0
    #allocation3 [shape = 'u8[512]{0}', space=vmem, size = 0x400, scoped, tag = 'input window, operand 4, single buffered']
    #allocation4 [shape = 's32[1]{0}', space=sflag, size = 0x4, scoped, tag = 'scoped memory for actor_forward.1']
    #allocation5 [shape = 's32[1]{0}', space=sflag, size = 0x4, scoped, tag = 'scoped memory for actor_forward.1']
    #allocation6 [shape = 'u8[1024]{0}', space=vmem, size = 0x400, scoped, tag = 'input window, operand 14, single buffered']
    #allocation7 [shape = 's32[1]{0}', space=sflag, size = 0x4, scoped, tag = 'scoped memory for actor_forward.1']
    #allocation8 [shape = 'u8[1024]{0}', space=vmem, size = 0x400, scoped, tag = 'input window, operand 16, single buffered']
    #allocation9 [shape = 'u8[1024]{0}', space=vmem, size = 0x400, scoped, tag = 'input window, operand 18, single buffered']
    #allocation10 [shape = 's32[1]{0}', space=sflag, size = 0x4, scoped, tag = 'scoped memory for actor_forward.1']
    #allocation11 [shape = 'u8[512]{0}', space=vmem, size = 0x400, scoped, tag = 'input window, operand 20, single buffered']
    #allocation12 [shape = 'u8[512]{0}', space=vmem, size = 0x400, scoped, tag = 'input window, operand 21, single buffered']
    #allocation13 [shape = 's32[1]{0}', space=sflag, size = 0x4, scoped, tag = 'scoped memory for actor_forward.1']
    #allocation14 [shape = 'u8[1024]{0}', space=vmem, size = 0x400, scoped, tag = 'output window, operand 0, single buffered']
    %28 = vsyncpa [#allocation4], 0
    %29 = vsyncpa [#allocation7], 0
    %30 = vsyncpa [#allocation10], 0
    %31 = vsyncpa [#allocation13], 0
    %32 = vsyncpa [#allocation5], 0
    // Predicated region
    $region2: #{actor_forward.1} parent=1 // pred_check
      _
    $region3: #{actor_forward.1} parent=1 // pred_check_branch
      %34 = sbr.rel (0) target = $region5
    $region4: #{actor_forward.1} parent=1 // pred_region
      _
    $region5: #{actor_forward.1} parent=1 // pred_fallthru
      _
    // Predicated region
    $region6: #{actor_forward.1} parent=1 // pred_check
      _
    $region7: #{actor_forward.1} parent=1 // pred_check_branch
      %36 = sbr.rel (0) target = $region9
    $region8: #{actor_forward.1} parent=1 // pred_region
      _
    $region9: #{actor_forward.1} parent=1 // pred_fallthru
      _
    // Predicated region
    $region10: #{actor_forward.1} parent=1 // pred_check
      _
    $region11: #{actor_forward.1} parent=1 // pred_check_branch
      %38 = sbr.rel (0) target = $region13
    $region12: #{actor_forward.1} parent=1 // pred_region
      _
    $region13: #{actor_forward.1} parent=1 // pred_fallthru
      _
    // Predicated region
    $region14: #{actor_forward.1} parent=1 // pred_check
      _
    $region15: #{actor_forward.1} parent=1 // pred_check_branch
      %40 = sbr.rel (0) target = $region17
    $region16: #{actor_forward.1} parent=1 // pred_region
      _
    $region17: #{actor_forward.1} parent=1 // pred_fallthru
      _
    // Predicated region
    $region18: #{actor_forward.1} parent=1 // pred_check
      _
    $region19: #{actor_forward.1} parent=1 // pred_check_branch
      %42 = sbr.rel (0) target = $region21
    $region20: #{actor_forward.1} parent=1 // pred_region
      %s44 = ssub.s32 16, 16
      %45 = vsyncadd [#allocation4], %s44
      %s47 = sshll.u32 [#allocation3], 4
      %s48 = int_to_ptr.vmem [resolvable:$true] %s47
      %50 = dma.hbm_to_vmem [thread:$0]  %s4, 16, %s48, [#allocation4]
    $region21: #{actor_forward.1} parent=1 // pred_fallthru
      _
    // Predicated region
    $region22: #{actor_forward.1} parent=1 // pred_check
      _
    $region23: #{actor_forward.1} parent=1 // pred_check_branch
      %52 = sbr.rel (0) target = $region25
    $region24: #{actor_forward.1} parent=1 // pred_region
      _
    $region25: #{actor_forward.1} parent=1 // pred_fallthru
      _
    // Predicated region
    $region26: #{actor_forward.1} parent=1 // pred_check
      _
    $region27: #{actor_forward.1} parent=1 // pred_check_branch
      %54 = sbr.rel (0) target = $region29
    $region28: #{actor_forward.1} parent=1 // pred_region
      _
    $region29: #{actor_forward.1} parent=1 // pred_fallthru
      _
    // Predicated region
    $region30: #{actor_forward.1} parent=1 // pred_check
      _
    $region31: #{actor_forward.1} parent=1 // pred_check_branch
      %56 = sbr.rel (0) target = $region33
    $region32: #{actor_forward.1} parent=1 // pred_region
      _
    $region33: #{actor_forward.1} parent=1 // pred_fallthru
      _
    // Predicated region
    $region34: #{actor_forward.1} parent=1 // pred_check
      _
    $region35: #{actor_forward.1} parent=1 // pred_check_branch
      %58 = sbr.rel (0) target = $region37
    $region36: #{actor_forward.1} parent=1 // pred_region
      _
    $region37: #{actor_forward.1} parent=1 // pred_fallthru
      _
    // Predicated region
    $region38: #{actor_forward.1} parent=1 // pred_check
      _
    $region39: #{actor_forward.1} parent=1 // pred_check_branch
      %60 = sbr.rel (0) target = $region41
    $region40: #{actor_forward.1} parent=1 // pred_region
      _
    $region41: #{actor_forward.1} parent=1 // pred_fallthru
      _
    // Predicated region
    $region42: #{actor_forward.1} parent=1 // pred_check
      _
    $region43: #{actor_forward.1} parent=1 // pred_check_branch
      %62 = sbr.rel (0) target = $region45
    $region44: #{actor_forward.1} parent=1 // pred_region
      _
    $region45: #{actor_forward.1} parent=1 // pred_fallthru
      _
    // Predicated region
    $region46: #{actor_forward.1} parent=1 // pred_check
      _
    $region47: #{actor_forward.1} parent=1 // pred_check_branch
      %64 = sbr.rel (0) target = $region49
    $region48: #{actor_forward.1} parent=1 // pred_region
      _
    $region49: #{actor_forward.1} parent=1 // pred_fallthru
      _
    // Predicated region
    $region50: #{actor_forward.1} parent=1 // pred_check
      _
    $region51: #{actor_forward.1} parent=1 // pred_check_branch
      %66 = sbr.rel (0) target = $region53
    $region52: #{actor_forward.1} parent=1 // pred_region
      _
    $region53: #{actor_forward.1} parent=1 // pred_fallthru
      _
    // Predicated region
    $region54: #{actor_forward.1} parent=1 // pred_check
      _
    $region55: #{actor_forward.1} parent=1 // pred_check_branch
      %68 = sbr.rel (0) target = $region57
    $region56: #{actor_forward.1} parent=1 // pred_region
      _
    $region57: #{actor_forward.1} parent=1 // pred_fallthru
      _
    // Predicated region
    $region58: #{actor_forward.1} parent=1 // pred_check
      _
    $region59: #{actor_forward.1} parent=1 // pred_check_branch
      %70 = sbr.rel (0) target = $region61
    $region60: #{actor_forward.1} parent=1 // pred_region
      %s72 = ssub.s32 32, 32
      %73 = vsyncadd [#allocation7], %s72
      %s75 = sshll.u32 [#allocation6], 4
      %s76 = int_to_ptr.vmem [resolvable:$true] %s75
      %78 = dma.hbm_to_vmem [thread:$0]  %s14, 32, %s76, [#allocation7]
    $region61: #{actor_forward.1} parent=1 // pred_fallthru
      _
    // Predicated region
    $region62: #{actor_forward.1} parent=1 // pred_check
      _
    $region63: #{actor_forward.1} parent=1 // pred_check_branch
      %80 = sbr.rel (0) target = $region65
    $region64: #{actor_forward.1} parent=1 // pred_region
      _
    $region65: #{actor_forward.1} parent=1 // pred_fallthru
      _
    // Predicated region
    $region66: #{actor_forward.1} parent=1 // pred_check
      _
    $region67: #{actor_forward.1} parent=1 // pred_check_branch
      %82 = sbr.rel (0) target = $region69
    $region68: #{actor_forward.1} parent=1 // pred_region
      %s84 = ssub.s32 32, 32
      %85 = vsyncadd [#allocation7], %s84
      %s87 = sshll.u32 [#allocation8], 4
      %s88 = int_to_ptr.vmem [resolvable:$true] %s87
      %90 = dma.hbm_to_vmem [thread:$0]  %s16, 32, %s88, [#allocation7]
    $region69: #{actor_forward.1} parent=1 // pred_fallthru
      _
    // Predicated region
    $region70: #{actor_forward.1} parent=1 // pred_check
      _
    $region71: #{actor_forward.1} parent=1 // pred_check_branch
      %92 = sbr.rel (0) target = $region73
    $region72: #{actor_forward.1} parent=1 // pred_region
      _
    $region73: #{actor_forward.1} parent=1 // pred_fallthru
      _
    // Predicated region
    $region74: #{actor_forward.1} parent=1 // pred_check
      _
    $region75: #{actor_forward.1} parent=1 // pred_check_branch
      %94 = sbr.rel (0) target = $region77
    $region76: #{actor_forward.1} parent=1 // pred_region
      %s96 = ssub.s32 32, 32
      %97 = vsyncadd [#allocation10], %s96
      %s99 = sshll.u32 [#allocation9], 4
      %s100 = int_to_ptr.vmem [resolvable:$true] %s99
      %102 = dma.hbm_to_vmem [thread:$0]  %s18, 32, %s100, [#allocation10]
    $region77: #{actor_forward.1} parent=1 // pred_fallthru
      _
    // Predicated region
    $region78: #{actor_forward.1} parent=1 // pred_check
      _
    $region79: #{actor_forward.1} parent=1 // pred_check_branch
      %104 = sbr.rel (0) target = $region81
    $region80: #{actor_forward.1} parent=1 // pred_region
      _
    $region81: #{actor_forward.1} parent=1 // pred_fallthru
      _
    // Predicated region
    $region82: #{actor_forward.1} parent=1 // pred_check
      _
    $region83: #{actor_forward.1} parent=1 // pred_check_branch
      %106 = sbr.rel (0) target = $region85
    $region84: #{actor_forward.1} parent=1 // pred_region
      %s108 = ssub.s32 16, 16
      %109 = vsyncadd [#allocation10], %s108
      %s111 = sshll.u32 [#allocation11], 4
      %s112 = int_to_ptr.vmem [resolvable:$true] %s111
      %114 = dma.hbm_to_vmem [thread:$0]  %s20, 16, %s112, [#allocation10]
    $region85: #{actor_forward.1} parent=1 // pred_fallthru
      _
    // Predicated region
    $region86: #{actor_forward.1} parent=1 // pred_check
      _
    $region87: #{actor_forward.1} parent=1 // pred_check_branch
      %116 = sbr.rel (0) target = $region89
    $region88: #{actor_forward.1} parent=1 // pred_region
      %s118 = ssub.s32 16, 16
      %119 = vsyncadd [#allocation13], %s118
      %s121 = sshll.u32 [#allocation12], 4
      %s122 = int_to_ptr.vmem [resolvable:$true] %s121
      %124 = dma.hbm_to_vmem [thread:$0]  %s21, 16, %s122, [#allocation13]
    $region89: #{actor_forward.1} parent=1 // pred_fallthru
      _
    // Predicated region
    $region90: #{actor_forward.1} parent=1 // pred_check
      _
    $region91: #{actor_forward.1} parent=1 // pred_check_branch
      %126 = sbr.rel (0) target = $region93
    $region92: #{actor_forward.1} parent=1 // pred_region
      %127 = dma.done [#allocation4], 16
    $region93: #{actor_forward.1} parent=1 // pred_fallthru
      _
    // Predicated region
    $region94: #{actor_forward.1} parent=1 // pred_check
      _
    $region95: #{actor_forward.1} parent=1 // pred_check_branch
      %129 = sbr.rel (0) target = $region97
    $region96: #{actor_forward.1} parent=1 // pred_region
      %130 = dma.done [#allocation7], 32
    $region97: #{actor_forward.1} parent=1 // pred_fallthru
      _
    // Predicated region
    $region98: #{actor_forward.1} parent=1 // pred_check
      _
    $region99: #{actor_forward.1} parent=1 // pred_check_branch
      %132 = sbr.rel (0) target = $region101
    $region100: #{actor_forward.1} parent=1 // pred_region
      %133 = dma.done [#allocation7], 32
    $region101: #{actor_forward.1} parent=1 // pred_fallthru
      _
    // Predicated region
    $region102: #{actor_forward.1} parent=1 // pred_check
      _
    $region103: #{actor_forward.1} parent=1 // pred_check_branch
      %135 = sbr.rel (0) target = $region105
    $region104: #{actor_forward.1} parent=1 // pred_region
      %136 = dma.done [#allocation10], 32
    $region105: #{actor_forward.1} parent=1 // pred_fallthru
      _
    // Predicated region
    $region106: #{actor_forward.1} parent=1 // pred_check
      _
    $region107: #{actor_forward.1} parent=1 // pred_check_branch
      %138 = sbr.rel (0) target = $region109
    $region108: #{actor_forward.1} parent=1 // pred_region
      %139 = dma.done [#allocation10], 16
    $region109: #{actor_forward.1} parent=1 // pred_fallthru
      _
    // Predicated region
    $region110: #{actor_forward.1} parent=1 // pred_check
      _
    $region111: #{actor_forward.1} parent=1 // pred_check_branch
      %141 = sbr.rel (0) target = $region113
    $region112: #{actor_forward.1} parent=1 // pred_region
      %142 = dma.done [#allocation13], 16
    $region113: #{actor_forward.1} parent=1 // pred_fallthru
      _
    %v144 = vld [vmem:[%s0] sm:$0xff]
    %v145 = vld [vmem:[%s0 + $0x8] sm:$0xff]
    %v146 = vld [vmem:[%s0 + $0x10] sm:$0xff]
    %v147 = vld [vmem:[%s0 + $0x18] sm:$0x3]
    %v152 = vcombine.high %v144, %v144
    %v154 = vunpack.c.l.s4 1983009808
    %v155 = vunpack.c.0.s8 %v154
    %v156 = vlaneseq
    %v157 = vshrl.u32 %v156, 7
    %v158 = vsub.s32 %v155, %v157
    %v159 = vrot.slane %v144, %v158
    %v161 = vunpack.c.l.s4 1983009808
    %v162 = vunpack.c.0.s8 %v161
    %v163 = vlaneseq
    %v164 = vshrl.u32 %v163, 7
    %v165 = vsub.s32 %v162, %v164
    %v166 = vrot.slane %v152, %v165
    %v167 = vcombine.high %v159, %v159
    %v168 = vcombine.high %v166, %v166
    %v169 = vcombine.high %v145, %v145
    %v171 = vunpack.c.l.s4 1983009808
    %v172 = vunpack.c.0.s8 %v171
    %v173 = vlaneseq
    %v174 = vshrl.u32 %v173, 7
    %v175 = vsub.s32 %v172, %v174
    %v176 = vrot.slane %v145, %v175
    %v178 = vunpack.c.l.s4 1983009808
    %v179 = vunpack.c.0.s8 %v178
    %v180 = vlaneseq
    %v181 = vshrl.u32 %v180, 7
    %v182 = vsub.s32 %v179, %v181
    %v183 = vrot.slane %v169, %v182
    %v184 = vcombine.high %v176, %v176
    %v185 = vcombine.high %v183, %v183
    %v186 = vcombine.high %v146, %v146
    %v188 = vunpack.c.l.s4 1983009808
    %v189 = vunpack.c.0.s8 %v188
    %v190 = vlaneseq
    %v191 = vshrl.u32 %v190, 7
    %v192 = vsub.s32 %v189, %v191
    %v193 = vrot.slane %v146, %v192
    %v195 = vunpack.c.l.s4 1983009808
    %v196 = vunpack.c.0.s8 %v195
    %v197 = vlaneseq
    %v198 = vshrl.u32 %v197, 7
    %v199 = vsub.s32 %v196, %v198
    %v200 = vrot.slane %v186, %v199
    %v201 = vcombine.high %v193, %v193
    %v202 = vcombine.high %v200, %v200
    %v204 = vunpack.c.l.s4 1983009808
    %v205 = vunpack.c.0.s8 %v204
    %v206 = vlaneseq
    %v207 = vshrl.u32 %v206, 7
    %v208 = vsub.s32 %v205, %v207
    %v209 = vrot.slane %v147, %v208
    %v223 = vpack.c.bf16 %v159, %v159
    %v224 = vpack.c.bf16 %v167, %v167
    %v225 = vpack.c.bf16 %v166, %v166
    %v226 = vpack.c.bf16 %v168, %v168
    %v227 = vpack.c.bf16 %v176, %v176
    %v228 = vpack.c.bf16 %v184, %v184
    %v229 = vpack.c.bf16 %v183, %v183
    %v230 = vpack.c.bf16 %v185, %v185
    %v231 = vpack.c.bf16 %v193, %v193
    %v232 = vpack.c.bf16 %v201, %v201
    %v233 = vpack.c.bf16 %v200, %v200
    %v234 = vpack.c.bf16 %v202, %v202
    %v235 = vpack.c.bf16 %v209, %v209
    %v236 = vld [vmem:[%s6] sm:$0xff]
    %v237 = vld [vmem:[%s6 + $0x8] sm:$0xff]
    %v238 = vld [vmem:[%s6 + $0x10] sm:$0xff]
    %v239 = vld [vmem:[%s6 + $0x18] sm:$0xff]
    %v240 = vld [vmem:[%s6 + $0x20] sm:$0xff]
    %v241 = vld [vmem:[%s6 + $0x28] sm:$0xff]
    %v242 = vld [vmem:[%s6 + $0x30] sm:$0xff]
    %v243 = vld [vmem:[%s6 + $0x38] sm:$0xff]
    %v244 = vld [vmem:[%s6 + $0x40] sm:$0xff]
    %v245 = vld [vmem:[%s6 + $0x48] sm:$0xff]
    %v246 = vld [vmem:[%s6 + $0x50] sm:$0xff]
    %v247 = vld [vmem:[%s6 + $0x58] sm:$0xff]
    %v248 = vld [vmem:[%s6 + $0x60] sm:$0xff]
    %v249 = vld [vmem:[%s6 + $0x68] sm:$0xff]
    %v250 = vld [vmem:[%s6 + $0x70] sm:$0xff]
    %v251 = vld [vmem:[%s6 + $0x78] sm:$0xff]
    %v252 = vld [vmem:[%s6 + $0x80] sm:$0xff]
    %v253 = vld [vmem:[%s6 + $0x88] sm:$0xff]
    %v254 = vld [vmem:[%s6 + $0x90] sm:$0xff]
    %v255 = vld [vmem:[%s6 + $0x98] sm:$0xff]
    %v256 = vld [vmem:[%s6 + $0xa0] sm:$0xff]
    %v257 = vld [vmem:[%s6 + $0xa8] sm:$0xff]
    %v258 = vld [vmem:[%s6 + $0xb0] sm:$0xff]
    %v259 = vld [vmem:[%s6 + $0xb8] sm:$0xff]
    %v260 = vld [vmem:[%s6 + $0xc0] sm:$0xff]
    %v261 = vld [vmem:[%s6 + $0xc8] sm:$0xff]
    %v262 = vld [vmem:[%s6 + $0xd0] sm:$0xff]
    %v263 = vld [vmem:[%s6 + $0xd8] sm:$0xff]
    %v264 = vld [vmem:[%s6 + $0xe0] sm:$0xff]
    %v265 = vld [vmem:[%s6 + $0xe8] sm:$0xff]
    %v266 = vld [vmem:[%s6 + $0xf0] sm:$0xff]
    %v267 = vld [vmem:[%s6 + $0xf8] sm:$0xff]
    %v268 = vld [vmem:[%s6 + $0x100] sm:$0xff]
    %v269 = vld [vmem:[%s6 + $0x108] sm:$0xff]
    %v270 = vld [vmem:[%s6 + $0x110] sm:$0xff]
    %v271 = vld [vmem:[%s6 + $0x118] sm:$0xff]
    %v272 = vld [vmem:[%s6 + $0x120] sm:$0xff]
    %v273 = vld [vmem:[%s6 + $0x128] sm:$0xff]
    %v274 = vld [vmem:[%s6 + $0x130] sm:$0xff]
    %v275 = vld [vmem:[%s6 + $0x138] sm:$0xff]
    %v276 = vld [vmem:[%s6 + $0x140] sm:$0xff]
    %v277 = vld [vmem:[%s6 + $0x148] sm:$0xff]
    %v278 = vld [vmem:[%s6 + $0x150] sm:$0xff]
    %v279 = vld [vmem:[%s6 + $0x158] sm:$0xff]
    %v280 = vld [vmem:[%s6 + $0x160] sm:$0xff]
    %v281 = vld [vmem:[%s6 + $0x168] sm:$0xff]
    %v282 = vld [vmem:[%s6 + $0x170] sm:$0xff]
    %v283 = vld [vmem:[%s6 + $0x178] sm:$0xff]
    %v284 = vld [vmem:[%s6 + $0x180] sm:$0xff]
    %v285 = vld [vmem:[%s6 + $0x188] sm:$0xff]
    %v286 = vld [vmem:[%s6 + $0x190] sm:$0xff]
    %v287 = vld [vmem:[%s6 + $0x198] sm:$0xff]
    %v288 = vld [vmem:[%s6 + $0x1a0] sm:$0xff]
    %v289 = vld [vmem:[%s6 + $0x1a8] sm:$0xff]
    %v290 = vld [vmem:[%s6 + $0x1b0] sm:$0xff]
    %v291 = vld [vmem:[%s6 + $0x1b8] sm:$0xff]
    %v292 = vld [vmem:[%s6 + $0x1c0] sm:$0xff]
    %v293 = vld [vmem:[%s6 + $0x1c8] sm:$0xff]
    %v294 = vld [vmem:[%s6 + $0x1d0] sm:$0xff]
    %v295 = vld [vmem:[%s6 + $0x1d8] sm:$0xff]
    %v296 = vld [vmem:[%s6 + $0x1e0] sm:$0xff]
    %v297 = vld [vmem:[%s6 + $0x1e8] sm:$0xff]
    %v298 = vld [vmem:[%s6 + $0x1f0] sm:$0xff]
    %v299 = vld [vmem:[%s6 + $0x1f8] sm:$0xff]
    %v300 = vld [vmem:[%s6 + $0x200] sm:$0xff]
    %v301 = vld [vmem:[%s6 + $0x208] sm:$0xff]
    %v302 = vld [vmem:[%s6 + $0x210] sm:$0xff]
    %v303 = vld [vmem:[%s6 + $0x218] sm:$0xff]
    %v304 = vld [vmem:[%s6 + $0x220] sm:$0xff]
    %v305 = vld [vmem:[%s6 + $0x228] sm:$0xff]
    %v306 = vld [vmem:[%s6 + $0x230] sm:$0xff]
    %v307 = vld [vmem:[%s6 + $0x238] sm:$0xff]
    %v308 = vld [vmem:[%s6 + $0x240] sm:$0xff]
    %v309 = vld [vmem:[%s6 + $0x248] sm:$0xff]
    %v310 = vld [vmem:[%s6 + $0x250] sm:$0xff]
    %v311 = vld [vmem:[%s6 + $0x258] sm:$0xff]
    %v312 = vld [vmem:[%s6 + $0x260] sm:$0xff]
    %v313 = vld [vmem:[%s6 + $0x268] sm:$0xff]
    %v314 = vld [vmem:[%s6 + $0x270] sm:$0xff]
    %v315 = vld [vmem:[%s6 + $0x278] sm:$0xff]
    %v316 = vld [vmem:[%s6 + $0x280] sm:$0xff]
    %v317 = vld [vmem:[%s6 + $0x288] sm:$0xff]
    %v318 = vld [vmem:[%s6 + $0x290] sm:$0xff]
    %v319 = vld [vmem:[%s6 + $0x298] sm:$0xff]
    %v320 = vld [vmem:[%s6 + $0x2a0] sm:$0xff]
    %v321 = vld [vmem:[%s6 + $0x2a8] sm:$0xff]
    %v322 = vld [vmem:[%s6 + $0x2b0] sm:$0xff]
    %v323 = vld [vmem:[%s6 + $0x2b8] sm:$0xff]
    %v324 = vld [vmem:[%s6 + $0x2c0] sm:$0xff]
    %v325 = vld [vmem:[%s6 + $0x2c8] sm:$0xff]
    %v326 = vld [vmem:[%s6 + $0x2d0] sm:$0xff]
    %v327 = vld [vmem:[%s6 + $0x2d8] sm:$0xff]
    %v328 = vld [vmem:[%s6 + $0x2e0] sm:$0xff]
    %v329 = vld [vmem:[%s6 + $0x2e8] sm:$0xff]
    %v330 = vld [vmem:[%s6 + $0x2f0] sm:$0xff]
    %v331 = vld [vmem:[%s6 + $0x2f8] sm:$0xff]
    %v332 = vld [vmem:[%s6 + $0x300] sm:$0xff]
    %v333 = vld [vmem:[%s6 + $0x308] sm:$0xff]
    %v334 = vld [vmem:[%s6 + $0x310] sm:$0xff]
    %v335 = vld [vmem:[%s6 + $0x318] sm:$0xff]
    %v336 = vld [vmem:[%s6 + $0x320] sm:$0xff]
    %v337 = vld [vmem:[%s6 + $0x328] sm:$0xff]
    %v338 = vld [vmem:[%s6 + $0x330] sm:$0xff]
    %v339 = vld [vmem:[%s6 + $0x338] sm:$0xff]
    %v340 = vld [vmem:[%s6 + $0x340] sm:$0xff]
    %v341 = vld [vmem:[%s6 + $0x348] sm:$0xff]
    %v342 = vld [vmem:[%s6 + $0x350] sm:$0xff]
    %v343 = vld [vmem:[%s6 + $0x358] sm:$0xff]
    %v344 = vld [vmem:[%s6 + $0x360] sm:$0xff]
    %v345 = vld [vmem:[%s6 + $0x368] sm:$0xff]
    %v346 = vld [vmem:[%s6 + $0x370] sm:$0xff]
    %v347 = vld [vmem:[%s6 + $0x378] sm:$0xff]
    %v348 = vld [vmem:[%s6 + $0x380] sm:$0xff]
    %v349 = vld [vmem:[%s6 + $0x388] sm:$0xff]
    %v350 = vld [vmem:[%s6 + $0x390] sm:$0xff]
    %v351 = vld [vmem:[%s6 + $0x398] sm:$0xff]
    %v352 = vld [vmem:[%s6 + $0x3a0] sm:$0xff]
    %v353 = vld [vmem:[%s6 + $0x3a8] sm:$0xff]
    %v354 = vld [vmem:[%s6 + $0x3b0] sm:$0xff]
    %v355 = vld [vmem:[%s6 + $0x3b8] sm:$0xff]
    %v356 = vld [vmem:[%s6 + $0x3c0] sm:$0xff]
    %v357 = vld [vmem:[%s6 + $0x3c8] sm:$0xff]
    %v358 = vld [vmem:[%s6 + $0x3d0] sm:$0xff]
    %v359 = vld [vmem:[%s6 + $0x3d8] sm:$0xff]
    %v360 = vld [vmem:[%s6 + $0x3e0] sm:$0xff]
    %v361 = vld [vmem:[%s6 + $0x3e8] sm:$0xff]
    %v362 = vld [vmem:[%s6 + $0x3f0] sm:$0xff]
    %v363 = vld [vmem:[%s6 + $0x3f8] sm:$0xff]
    %v364 = vld [vmem:[%s6 + $0x400] sm:$0xff]
    %v365 = vld [vmem:[%s6 + $0x408] sm:$0xff]
    %v366 = vld [vmem:[%s6 + $0x410] sm:$0xff]
    %v367 = vld [vmem:[%s6 + $0x418] sm:$0xff]
    %v368 = vld [vmem:[%s6 + $0x420] sm:$0xff]
    %v369 = vld [vmem:[%s6 + $0x428] sm:$0xff]
    %v370 = vld [vmem:[%s6 + $0x430] sm:$0xff]
    %v371 = vld [vmem:[%s6 + $0x438] sm:$0xff]
    %v372 = vld [vmem:[%s6 + $0x440] sm:$0xff]
    %v373 = vld [vmem:[%s6 + $0x448] sm:$0xff]
    %v374 = vld [vmem:[%s6 + $0x450] sm:$0xff]
    %v375 = vld [vmem:[%s6 + $0x458] sm:$0xff]
    %v376 = vld [vmem:[%s6 + $0x460] sm:$0xff]
    %v377 = vld [vmem:[%s6 + $0x468] sm:$0xff]
    %v378 = vld [vmem:[%s6 + $0x470] sm:$0xff]
    %v379 = vld [vmem:[%s6 + $0x478] sm:$0xff]
    %v380 = vld [vmem:[%s6 + $0x480] sm:$0xff]
    %v381 = vld [vmem:[%s6 + $0x488] sm:$0xff]
    %v382 = vld [vmem:[%s6 + $0x490] sm:$0xff]
    %v383 = vld [vmem:[%s6 + $0x498] sm:$0xff]
    %v384 = vld [vmem:[%s6 + $0x4a0] sm:$0xff]
    %v385 = vld [vmem:[%s6 + $0x4a8] sm:$0xff]
    %v386 = vld [vmem:[%s6 + $0x4b0] sm:$0xff]
    %v387 = vld [vmem:[%s6 + $0x4b8] sm:$0xff]
    %v388 = vld [vmem:[%s6 + $0x4c0] sm:$0xff]
    %v389 = vld [vmem:[%s6 + $0x4c8] sm:$0xff]
    %v390 = vld [vmem:[%s6 + $0x4d0] sm:$0xff]
    %v391 = vld [vmem:[%s6 + $0x4d8] sm:$0xff]
    %v392 = vld [vmem:[%s6 + $0x4e0] sm:$0xff]
    %v393 = vld [vmem:[%s6 + $0x4e8] sm:$0xff]
    %v394 = vld [vmem:[%s6 + $0x4f0] sm:$0xff]
    %v395 = vld [vmem:[%s6 + $0x4f8] sm:$0xff]
    %v396 = vld [vmem:[%s6 + $0x500] sm:$0xff]
    %v397 = vld [vmem:[%s6 + $0x508] sm:$0xff]
    %v398 = vld [vmem:[%s6 + $0x510] sm:$0xff]
    %v399 = vld [vmem:[%s6 + $0x518] sm:$0xff]
    %v400 = vld [vmem:[%s6 + $0x520] sm:$0xff]
    %v401 = vld [vmem:[%s6 + $0x528] sm:$0xff]
    %v402 = vld [vmem:[%s6 + $0x530] sm:$0xff]
    %v403 = vld [vmem:[%s6 + $0x538] sm:$0xff]
    %v404 = vld [vmem:[%s6 + $0x540] sm:$0xff]
    %v405 = vld [vmem:[%s6 + $0x548] sm:$0xff]
    %v406 = vld [vmem:[%s6 + $0x550] sm:$0xff]
    %v407 = vld [vmem:[%s6 + $0x558] sm:$0xff]
    %v408 = vld [vmem:[%s6 + $0x560] sm:$0xff]
    %v409 = vld [vmem:[%s6 + $0x568] sm:$0xff]
    %v410 = vld [vmem:[%s6 + $0x570] sm:$0xff]
    %v411 = vld [vmem:[%s6 + $0x578] sm:$0xff]
    %v412 = vld [vmem:[%s6 + $0x580] sm:$0xff]
    %v413 = vld [vmem:[%s6 + $0x588] sm:$0xff]
    %v414 = vld [vmem:[%s6 + $0x590] sm:$0xff]
    %v415 = vld [vmem:[%s6 + $0x598] sm:$0xff]
    %v416 = vld [vmem:[%s6 + $0x5a0] sm:$0xff]
    %v417 = vld [vmem:[%s6 + $0x5a8] sm:$0xff]
    %v418 = vld [vmem:[%s6 + $0x5b0] sm:$0xff]
    %v419 = vld [vmem:[%s6 + $0x5b8] sm:$0xff]
    %v420 = vld [vmem:[%s6 + $0x5c0] sm:$0xff]
    %v421 = vld [vmem:[%s6 + $0x5c8] sm:$0xff]
    %v422 = vld [vmem:[%s6 + $0x5d0] sm:$0xff]
    %v423 = vld [vmem:[%s6 + $0x5d8] sm:$0xff]
    %v424 = vld [vmem:[%s6 + $0x5e0] sm:$0xff]
    %v425 = vld [vmem:[%s6 + $0x5e8] sm:$0xff]
    %v426 = vld [vmem:[%s6 + $0x5f0] sm:$0xff]
    %v427 = vld [vmem:[%s6 + $0x5f8] sm:$0xff]
    %v428 = vld [vmem:[%s6 + $0x600] sm:$0xff]
    %v429 = vld [vmem:[%s6 + $0x608] sm:$0xff]
    %v430 = vld [vmem:[%s6 + $0x610] sm:$0xff]
    %v431 = vld [vmem:[%s6 + $0x618] sm:$0xff]
    %v432 = vld [vmem:[%s6 + $0x620] sm:$0xff]
    %v433 = vld [vmem:[%s6 + $0x628] sm:$0xff]
    %v434 = vld [vmem:[%s6 + $0x630] sm:$0xff]
    %v435 = vld [vmem:[%s6 + $0x638] sm:$0xff]
    %v436 = vld [vmem:[%s7] sm:$0x3]
    %v438 = vlaneseq
    %v439 = vshrl.u32 %v438, 7
    %v440 = vsub.s32 0, %v439
    %v441 = vrot.slane %v436, %v440
    %v442 = vlaneseq
    %v443 = vshrl.u32 %v442, 7
    %v444 = vsub.s32 1, %v443
    %v445 = vrot.slane %v436, %v444
    %v648 = vunpack.c.l.b16 %v236
    %v649 = vunpack.c.h.b16 %v236
    %v650 = vunpack.c.l.b16 %v237
    %v651 = vunpack.c.h.b16 %v237
    %v652 = vunpack.c.l.b16 %v238
    %v653 = vunpack.c.h.b16 %v238
    %v654 = vunpack.c.l.b16 %v239
    %v655 = vunpack.c.h.b16 %v239
    %v656 = vunpack.c.l.b16 %v240
    %v657 = vunpack.c.h.b16 %v240
    %v658 = vunpack.c.l.b16 %v241
    %v659 = vunpack.c.h.b16 %v241
    %v660 = vunpack.c.l.b16 %v242
    %v661 = vunpack.c.h.b16 %v242
    %v662 = vunpack.c.l.b16 %v243
    %v663 = vunpack.c.h.b16 %v243
    %v664 = vunpack.c.l.b16 %v244
    %v665 = vunpack.c.h.b16 %v244
    %v666 = vunpack.c.l.b16 %v245
    %v667 = vunpack.c.h.b16 %v245
    %v668 = vunpack.c.l.b16 %v246
    %v669 = vunpack.c.h.b16 %v246
    %v670 = vunpack.c.l.b16 %v247
    %v671 = vunpack.c.h.b16 %v247
    %v672 = vunpack.c.l.b16 %v248
    %v673 = vunpack.c.h.b16 %v248
    %v674 = vunpack.c.l.b16 %v249
    %v675 = vunpack.c.h.b16 %v249
    %v676 = vunpack.c.l.b16 %v250
    %v677 = vunpack.c.h.b16 %v250
    %v678 = vunpack.c.l.b16 %v251
    %v679 = vunpack.c.h.b16 %v251
    %v680 = vunpack.c.l.b16 %v252
    %v681 = vunpack.c.h.b16 %v252
    %v682 = vunpack.c.l.b16 %v253
    %v683 = vunpack.c.h.b16 %v253
    %v684 = vunpack.c.l.b16 %v254
    %v685 = vunpack.c.h.b16 %v254
    %v686 = vunpack.c.l.b16 %v255
    %v687 = vunpack.c.h.b16 %v255
    %v688 = vunpack.c.l.b16 %v256
    %v689 = vunpack.c.h.b16 %v256
    %v690 = vunpack.c.l.b16 %v257
    %v691 = vunpack.c.h.b16 %v257
    %v692 = vunpack.c.l.b16 %v258
    %v693 = vunpack.c.h.b16 %v258
    %v694 = vunpack.c.l.b16 %v259
    %v695 = vunpack.c.h.b16 %v259
    %v696 = vunpack.c.l.b16 %v260
    %v697 = vunpack.c.h.b16 %v260
    %v698 = vunpack.c.l.b16 %v261
    %v699 = vunpack.c.h.b16 %v261
    %v700 = vunpack.c.l.b16 %v262
    %v701 = vunpack.c.h.b16 %v262
    %v702 = vunpack.c.l.b16 %v263
    %v703 = vunpack.c.h.b16 %v263
    %v704 = vunpack.c.l.b16 %v264
    %v705 = vunpack.c.h.b16 %v264
    %v706 = vunpack.c.l.b16 %v265
    %v707 = vunpack.c.h.b16 %v265
    %v708 = vunpack.c.l.b16 %v266
    %v709 = vunpack.c.h.b16 %v266
    %v710 = vunpack.c.l.b16 %v267
    %v711 = vunpack.c.h.b16 %v267
    %v712 = vunpack.c.l.b16 %v268
    %v713 = vunpack.c.h.b16 %v268
    %v714 = vunpack.c.l.b16 %v269
    %v715 = vunpack.c.h.b16 %v269
    %v716 = vunpack.c.l.b16 %v270
    %v717 = vunpack.c.h.b16 %v270
    %v718 = vunpack.c.l.b16 %v271
    %v719 = vunpack.c.h.b16 %v271
    %v720 = vunpack.c.l.b16 %v272
    %v721 = vunpack.c.h.b16 %v272
    %v722 = vunpack.c.l.b16 %v273
    %v723 = vunpack.c.h.b16 %v273
    %v724 = vunpack.c.l.b16 %v274
    %v725 = vunpack.c.h.b16 %v274
    %v726 = vunpack.c.l.b16 %v275
    %v727 = vunpack.c.h.b16 %v275
    %v728 = vunpack.c.l.b16 %v276
    %v729 = vunpack.c.h.b16 %v276
    %v730 = vunpack.c.l.b16 %v277
    %v731 = vunpack.c.h.b16 %v277
    %v732 = vunpack.c.l.b16 %v278
    %v733 = vunpack.c.h.b16 %v278
    %v734 = vunpack.c.l.b16 %v279
    %v735 = vunpack.c.h.b16 %v279
    %v736 = vunpack.c.l.b16 %v280
    %v737 = vunpack.c.h.b16 %v280
    %v738 = vunpack.c.l.b16 %v281
    %v739 = vunpack.c.h.b16 %v281
    %v740 = vunpack.c.l.b16 %v282
    %v741 = vunpack.c.h.b16 %v282
    %v742 = vunpack.c.l.b16 %v283
    %v743 = vunpack.c.h.b16 %v283
    %v744 = vunpack.c.l.b16 %v284
    %v745 = vunpack.c.h.b16 %v284
    %v746 = vunpack.c.l.b16 %v285
    %v747 = vunpack.c.h.b16 %v285
    %v748 = vunpack.c.l.b16 %v286
    %v749 = vunpack.c.h.b16 %v286
    %v750 = vunpack.c.l.b16 %v287
    %v751 = vunpack.c.h.b16 %v287
    %v752 = vunpack.c.l.b16 %v288
    %v753 = vunpack.c.h.b16 %v288
    %v754 = vunpack.c.l.b16 %v289
    %v755 = vunpack.c.h.b16 %v289
    %v756 = vunpack.c.l.b16 %v290
    %v757 = vunpack.c.h.b16 %v290
    %v758 = vunpack.c.l.b16 %v291
    %v759 = vunpack.c.h.b16 %v291
    %v760 = vunpack.c.l.b16 %v292
    %v761 = vunpack.c.h.b16 %v292
    %v762 = vunpack.c.l.b16 %v293
    %v763 = vunpack.c.h.b16 %v293
    %v764 = vunpack.c.l.b16 %v294
    %v765 = vunpack.c.h.b16 %v294
    %v766 = vunpack.c.l.b16 %v295
    %v767 = vunpack.c.h.b16 %v295
    %v768 = vunpack.c.l.b16 %v296
    %v769 = vunpack.c.h.b16 %v296
    %v770 = vunpack.c.l.b16 %v297
    %v771 = vunpack.c.h.b16 %v297
    %v772 = vunpack.c.l.b16 %v298
    %v773 = vunpack.c.h.b16 %v298
    %v774 = vunpack.c.l.b16 %v299
    %v775 = vunpack.c.h.b16 %v299
    %v776 = vunpack.c.l.b16 %v300
    %v777 = vunpack.c.h.b16 %v300
    %v778 = vunpack.c.l.b16 %v301
    %v779 = vunpack.c.h.b16 %v301
    %v780 = vunpack.c.l.b16 %v302
    %v781 = vunpack.c.h.b16 %v302
    %v782 = vunpack.c.l.b16 %v303
    %v783 = vunpack.c.h.b16 %v303
    %v784 = vunpack.c.l.b16 %v304
    %v785 = vunpack.c.h.b16 %v304
    %v786 = vunpack.c.l.b16 %v305
    %v787 = vunpack.c.h.b16 %v305
    %v788 = vunpack.c.l.b16 %v306
    %v789 = vunpack.c.h.b16 %v306
    %v790 = vunpack.c.l.b16 %v307
    %v791 = vunpack.c.h.b16 %v307
    %v792 = vunpack.c.l.b16 %v308
    %v793 = vunpack.c.h.b16 %v308
    %v794 = vunpack.c.l.b16 %v309
    %v795 = vunpack.c.h.b16 %v309
    %v796 = vunpack.c.l.b16 %v310
    %v797 = vunpack.c.h.b16 %v310
    %v798 = vunpack.c.l.b16 %v311
    %v799 = vunpack.c.h.b16 %v311
    %v800 = vunpack.c.l.b16 %v312
    %v801 = vunpack.c.h.b16 %v312
    %v802 = vunpack.c.l.b16 %v313
    %v803 = vunpack.c.h.b16 %v313
    %v804 = vunpack.c.l.b16 %v314
    %v805 = vunpack.c.h.b16 %v314
    %v806 = vunpack.c.l.b16 %v315
    %v807 = vunpack.c.h.b16 %v315
    %v808 = vunpack.c.l.b16 %v316
    %v809 = vunpack.c.h.b16 %v316
    %v810 = vunpack.c.l.b16 %v317
    %v811 = vunpack.c.h.b16 %v317
    %v812 = vunpack.c.l.b16 %v318
    %v813 = vunpack.c.h.b16 %v318
    %v814 = vunpack.c.l.b16 %v319
    %v815 = vunpack.c.h.b16 %v319
    %v816 = vunpack.c.l.b16 %v320
    %v817 = vunpack.c.h.b16 %v320
    %v818 = vunpack.c.l.b16 %v321
    %v819 = vunpack.c.h.b16 %v321
    %v820 = vunpack.c.l.b16 %v322
    %v821 = vunpack.c.h.b16 %v322
    %v822 = vunpack.c.l.b16 %v323
    %v823 = vunpack.c.h.b16 %v323
    %v824 = vunpack.c.l.b16 %v324
    %v825 = vunpack.c.h.b16 %v324
    %v826 = vunpack.c.l.b16 %v325
    %v827 = vunpack.c.h.b16 %v325
    %v828 = vunpack.c.l.b16 %v326
    %v829 = vunpack.c.h.b16 %v326
    %v830 = vunpack.c.l.b16 %v327
    %v831 = vunpack.c.h.b16 %v327
    %v832 = vunpack.c.l.b16 %v328
    %v833 = vunpack.c.h.b16 %v328
    %v834 = vunpack.c.l.b16 %v329
    %v835 = vunpack.c.h.b16 %v329
    %v836 = vunpack.c.l.b16 %v330
    %v837 = vunpack.c.h.b16 %v330
    %v838 = vunpack.c.l.b16 %v331
    %v839 = vunpack.c.h.b16 %v331
    %v840 = vunpack.c.l.b16 %v332
    %v841 = vunpack.c.h.b16 %v332
    %v842 = vunpack.c.l.b16 %v333
    %v843 = vunpack.c.h.b16 %v333
    %v844 = vunpack.c.l.b16 %v334
    %v845 = vunpack.c.h.b16 %v334
    %v846 = vunpack.c.l.b16 %v335
    %v847 = vunpack.c.h.b16 %v335
    %v848 = vunpack.c.l.b16 %v336
    %v849 = vunpack.c.h.b16 %v336
    %v850 = vunpack.c.l.b16 %v337
    %v851 = vunpack.c.h.b16 %v337
    %v852 = vunpack.c.l.b16 %v338
    %v853 = vunpack.c.h.b16 %v338
    %v854 = vunpack.c.l.b16 %v339
    %v855 = vunpack.c.h.b16 %v339
    %v856 = vunpack.c.l.b16 %v340
    %v857 = vunpack.c.h.b16 %v340
    %v858 = vunpack.c.l.b16 %v341
    %v859 = vunpack.c.h.b16 %v341
    %v860 = vunpack.c.l.b16 %v342
    %v861 = vunpack.c.h.b16 %v342
    %v862 = vunpack.c.l.b16 %v343
    %v863 = vunpack.c.h.b16 %v343
    %v864 = vunpack.c.l.b16 %v344
    %v865 = vunpack.c.h.b16 %v344
    %v866 = vunpack.c.l.b16 %v345
    %v867 = vunpack.c.h.b16 %v345
    %v868 = vunpack.c.l.b16 %v346
    %v869 = vunpack.c.h.b16 %v346
    %v870 = vunpack.c.l.b16 %v347
    %v871 = vunpack.c.h.b16 %v347
    %v872 = vunpack.c.l.b16 %v348
    %v873 = vunpack.c.h.b16 %v348
    %v874 = vunpack.c.l.b16 %v349
    %v875 = vunpack.c.h.b16 %v349
    %v876 = vunpack.c.l.b16 %v350
    %v877 = vunpack.c.h.b16 %v350
    %v878 = vunpack.c.l.b16 %v351
    %v879 = vunpack.c.h.b16 %v351
    %v880 = vunpack.c.l.b16 %v352
    %v881 = vunpack.c.h.b16 %v352
    %v882 = vunpack.c.l.b16 %v353
    %v883 = vunpack.c.h.b16 %v353
    %v884 = vunpack.c.l.b16 %v354
    %v885 = vunpack.c.h.b16 %v354
    %v886 = vunpack.c.l.b16 %v355
    %v887 = vunpack.c.h.b16 %v355
    %v888 = vunpack.c.l.b16 %v356
    %v889 = vunpack.c.h.b16 %v356
    %v890 = vunpack.c.l.b16 %v357
    %v891 = vunpack.c.h.b16 %v357
    %v892 = vunpack.c.l.b16 %v358
    %v893 = vunpack.c.h.b16 %v358
    %v894 = vunpack.c.l.b16 %v359
    %v895 = vunpack.c.h.b16 %v359
    %v896 = vunpack.c.l.b16 %v360
    %v897 = vunpack.c.h.b16 %v360
    %v898 = vunpack.c.l.b16 %v361
    %v899 = vunpack.c.h.b16 %v361
    %v900 = vunpack.c.l.b16 %v362
    %v901 = vunpack.c.h.b16 %v362
    %v902 = vunpack.c.l.b16 %v363
    %v903 = vunpack.c.h.b16 %v363
    %v904 = vunpack.c.l.b16 %v364
    %v905 = vunpack.c.h.b16 %v364
    %v906 = vunpack.c.l.b16 %v365
    %v907 = vunpack.c.h.b16 %v365
    %v908 = vunpack.c.l.b16 %v366
    %v909 = vunpack.c.h.b16 %v366
    %v910 = vunpack.c.l.b16 %v367
    %v911 = vunpack.c.h.b16 %v367
    %v912 = vunpack.c.l.b16 %v368
    %v913 = vunpack.c.h.b16 %v368
    %v914 = vunpack.c.l.b16 %v369
    %v915 = vunpack.c.h.b16 %v369
    %v916 = vunpack.c.l.b16 %v370
    %v917 = vunpack.c.h.b16 %v370
    %v918 = vunpack.c.l.b16 %v371
    %v919 = vunpack.c.h.b16 %v371
    %v920 = vunpack.c.l.b16 %v372
    %v921 = vunpack.c.h.b16 %v372
    %v922 = vunpack.c.l.b16 %v373
    %v923 = vunpack.c.h.b16 %v373
    %v924 = vunpack.c.l.b16 %v374
    %v925 = vunpack.c.h.b16 %v374
    %v926 = vunpack.c.l.b16 %v375
    %v927 = vunpack.c.h.b16 %v375
    %v928 = vunpack.c.l.b16 %v376
    %v929 = vunpack.c.h.b16 %v376
    %v930 = vunpack.c.l.b16 %v377
    %v931 = vunpack.c.h.b16 %v377
    %v932 = vunpack.c.l.b16 %v378
    %v933 = vunpack.c.h.b16 %v378
    %v934 = vunpack.c.l.b16 %v379
    %v935 = vunpack.c.h.b16 %v379
    %v936 = vunpack.c.l.b16 %v380
    %v937 = vunpack.c.h.b16 %v380
    %v938 = vunpack.c.l.b16 %v381
    %v939 = vunpack.c.h.b16 %v381
    %v940 = vunpack.c.l.b16 %v382
    %v941 = vunpack.c.h.b16 %v382
    %v942 = vunpack.c.l.b16 %v383
    %v943 = vunpack.c.h.b16 %v383
    %v944 = vunpack.c.l.b16 %v384
    %v945 = vunpack.c.h.b16 %v384
    %v946 = vunpack.c.l.b16 %v385
    %v947 = vunpack.c.h.b16 %v385
    %v948 = vunpack.c.l.b16 %v386
    %v949 = vunpack.c.h.b16 %v386
    %v950 = vunpack.c.l.b16 %v387
    %v951 = vunpack.c.h.b16 %v387
    %v952 = vunpack.c.l.b16 %v388
    %v953 = vunpack.c.h.b16 %v388
    %v954 = vunpack.c.l.b16 %v389
    %v955 = vunpack.c.h.b16 %v389
    %v956 = vunpack.c.l.b16 %v390
    %v957 = vunpack.c.h.b16 %v390
    %v958 = vunpack.c.l.b16 %v391
    %v959 = vunpack.c.h.b16 %v391
    %v960 = vunpack.c.l.b16 %v392
    %v961 = vunpack.c.h.b16 %v392
    %v962 = vunpack.c.l.b16 %v393
    %v963 = vunpack.c.h.b16 %v393
    %v964 = vunpack.c.l.b16 %v394
    %v965 = vunpack.c.h.b16 %v394
    %v966 = vunpack.c.l.b16 %v395
    %v967 = vunpack.c.h.b16 %v395
    %v968 = vunpack.c.l.b16 %v396
    %v969 = vunpack.c.h.b16 %v396
    %v970 = vunpack.c.l.b16 %v397
    %v971 = vunpack.c.h.b16 %v397
    %v972 = vunpack.c.l.b16 %v398
    %v973 = vunpack.c.h.b16 %v398
    %v974 = vunpack.c.l.b16 %v399
    %v975 = vunpack.c.h.b16 %v399
    %v976 = vunpack.c.l.b16 %v400
    %v977 = vunpack.c.h.b16 %v400
    %v978 = vunpack.c.l.b16 %v401
    %v979 = vunpack.c.h.b16 %v401
    %v980 = vunpack.c.l.b16 %v402
    %v981 = vunpack.c.h.b16 %v402
    %v982 = vunpack.c.l.b16 %v403
    %v983 = vunpack.c.h.b16 %v403
    %v984 = vunpack.c.l.b16 %v404
    %v985 = vunpack.c.h.b16 %v404
    %v986 = vunpack.c.l.b16 %v405
    %v987 = vunpack.c.h.b16 %v405
    %v988 = vunpack.c.l.b16 %v406
    %v989 = vunpack.c.h.b16 %v406
    %v990 = vunpack.c.l.b16 %v407
    %v991 = vunpack.c.h.b16 %v407
    %v992 = vunpack.c.l.b16 %v408
    %v993 = vunpack.c.h.b16 %v408
    %v994 = vunpack.c.l.b16 %v409
    %v995 = vunpack.c.h.b16 %v409
    %v996 = vunpack.c.l.b16 %v410
    %v997 = vunpack.c.h.b16 %v410
    %v998 = vunpack.c.l.b16 %v411
    %v999 = vunpack.c.h.b16 %v411
    %v1000 = vunpack.c.l.b16 %v412
    %v1001 = vunpack.c.h.b16 %v412
    %v1002 = vunpack.c.l.b16 %v413
    %v1003 = vunpack.c.h.b16 %v413
    %v1004 = vunpack.c.l.b16 %v414
    %v1005 = vunpack.c.h.b16 %v414
    %v1006 = vunpack.c.l.b16 %v415
    %v1007 = vunpack.c.h.b16 %v415
    %v1008 = vunpack.c.l.b16 %v416
    %v1009 = vunpack.c.h.b16 %v416
    %v1010 = vunpack.c.l.b16 %v417
    %v1011 = vunpack.c.h.b16 %v417
    %v1012 = vunpack.c.l.b16 %v418
    %v1013 = vunpack.c.h.b16 %v418
    %v1014 = vunpack.c.l.b16 %v419
    %v1015 = vunpack.c.h.b16 %v419
    %v1016 = vunpack.c.l.b16 %v420
    %v1017 = vunpack.c.h.b16 %v420
    %v1018 = vunpack.c.l.b16 %v421
    %v1019 = vunpack.c.h.b16 %v421
    %v1020 = vunpack.c.l.b16 %v422
    %v1021 = vunpack.c.h.b16 %v422
    %v1022 = vunpack.c.l.b16 %v423
    %v1023 = vunpack.c.h.b16 %v423
    %v1024 = vunpack.c.l.b16 %v424
    %v1025 = vunpack.c.h.b16 %v424
    %v1026 = vunpack.c.l.b16 %v425
    %v1027 = vunpack.c.h.b16 %v425
    %v1028 = vunpack.c.l.b16 %v426
    %v1029 = vunpack.c.h.b16 %v426
    %v1030 = vunpack.c.l.b16 %v427
    %v1031 = vunpack.c.h.b16 %v427
    %v1032 = vunpack.c.l.b16 %v428
    %v1033 = vunpack.c.h.b16 %v428
    %v1034 = vunpack.c.l.b16 %v429
    %v1035 = vunpack.c.h.b16 %v429
    %v1036 = vunpack.c.l.b16 %v430
    %v1037 = vunpack.c.h.b16 %v430
    %v1038 = vunpack.c.l.b16 %v431
    %v1039 = vunpack.c.h.b16 %v431
    %v1040 = vunpack.c.l.b16 %v432
    %v1041 = vunpack.c.h.b16 %v432
    %v1042 = vunpack.c.l.b16 %v433
    %v1043 = vunpack.c.h.b16 %v433
    %v1044 = vunpack.c.l.b16 %v434
    %v1045 = vunpack.c.h.b16 %v434
    %v1046 = vunpack.c.l.b16 %v435
    %v1047 = vunpack.c.h.b16 %v435
    %v1048 = vpack.c.b16 %v650, %v648
    %v1049 = vpack.c.b16 %v651, %v649
    %v1050 = vpack.c.b16 %v654, %v652
    %v1051 = vpack.c.b16 %v655, %v653
    %v1052 = vpack.c.b16 %v658, %v656
    %v1053 = vpack.c.b16 %v659, %v657
    %v1054 = vpack.c.b16 %v662, %v660
    %v1055 = vpack.c.b16 %v663, %v661
    %v1056 = vpack.c.b16 %v666, %v664
    %v1057 = vpack.c.b16 %v667, %v665
    %v1058 = vpack.c.b16 %v670, %v668
    %v1059 = vpack.c.b16 %v671, %v669
    %v1060 = vpack.c.b16 %v674, %v672
    %v1061 = vpack.c.b16 %v675, %v673
    %v1062 = vpack.c.b16 %v678, %v676
    %v1063 = vpack.c.b16 %v679, %v677
    %v1064 = vpack.c.b16 %v682, %v680
    %v1065 = vpack.c.b16 %v683, %v681
    %v1066 = vpack.c.b16 %v686, %v684
    %v1067 = vpack.c.b16 %v687, %v685
    %v1068 = vpack.c.b16 %v690, %v688
    %v1069 = vpack.c.b16 %v691, %v689
    %v1070 = vpack.c.b16 %v694, %v692
    %v1071 = vpack.c.b16 %v695, %v693
    %v1072 = vpack.c.b16 %v698, %v696
    %v1073 = vpack.c.b16 %v699, %v697
    %v1074 = vpack.c.b16 %v702, %v700
    %v1075 = vpack.c.b16 %v703, %v701
    %v1076 = vpack.c.b16 %v706, %v704
    %v1077 = vpack.c.b16 %v707, %v705
    %v1078 = vpack.c.b16 %v710, %v708
    %v1079 = vpack.c.b16 %v711, %v709
    %v1080 = vpack.c.b16 %v714, %v712
    %v1081 = vpack.c.b16 %v715, %v713
    %v1082 = vpack.c.b16 %v718, %v716
    %v1083 = vpack.c.b16 %v719, %v717
    %v1084 = vpack.c.b16 %v722, %v720
    %v1085 = vpack.c.b16 %v723, %v721
    %v1086 = vpack.c.b16 %v726, %v724
    %v1087 = vpack.c.b16 %v727, %v725
    %v1088 = vpack.c.b16 %v730, %v728
    %v1089 = vpack.c.b16 %v731, %v729
    %v1090 = vpack.c.b16 %v734, %v732
    %v1091 = vpack.c.b16 %v735, %v733
    %v1092 = vpack.c.b16 %v738, %v736
    %v1093 = vpack.c.b16 %v739, %v737
    %v1094 = vpack.c.b16 %v742, %v740
    %v1095 = vpack.c.b16 %v743, %v741
    %v1096 = vpack.c.b16 %v746, %v744
    %v1097 = vpack.c.b16 %v747, %v745
    %v1098 = vpack.c.b16 %v750, %v748
    %v1099 = vpack.c.b16 %v751, %v749
    %v1100 = vpack.c.b16 %v754, %v752
    %v1101 = vpack.c.b16 %v755, %v753
    %v1102 = vpack.c.b16 %v758, %v756
    %v1103 = vpack.c.b16 %v759, %v757
    %v1104 = vpack.c.b16 %v762, %v760
    %v1105 = vpack.c.b16 %v763, %v761
    %v1106 = vpack.c.b16 %v766, %v764
    %v1107 = vpack.c.b16 %v767, %v765
    %v1108 = vpack.c.b16 %v770, %v768
    %v1109 = vpack.c.b16 %v771, %v769
    %v1110 = vpack.c.b16 %v774, %v772
    %v1111 = vpack.c.b16 %v775, %v773
    %v1112 = vpack.c.b16 %v778, %v776
    %v1113 = vpack.c.b16 %v779, %v777
    %v1114 = vpack.c.b16 %v782, %v780
    %v1115 = vpack.c.b16 %v783, %v781
    %v1116 = vpack.c.b16 %v786, %v784
    %v1117 = vpack.c.b16 %v787, %v785
    %v1118 = vpack.c.b16 %v790, %v788
    %v1119 = vpack.c.b16 %v791, %v789
    %v1120 = vpack.c.b16 %v794, %v792
    %v1121 = vpack.c.b16 %v795, %v793
    %v1122 = vpack.c.b16 %v798, %v796
    %v1123 = vpack.c.b16 %v799, %v797
    %v1124 = vpack.c.b16 %v802, %v800
    %v1125 = vpack.c.b16 %v803, %v801
    %v1126 = vpack.c.b16 %v806, %v804
    %v1127 = vpack.c.b16 %v807, %v805
    %v1128 = vpack.c.b16 %v810, %v808
    %v1129 = vpack.c.b16 %v811, %v809
    %v1130 = vpack.c.b16 %v814, %v812
    %v1131 = vpack.c.b16 %v815, %v813
    %v1132 = vpack.c.b16 %v818, %v816
    %v1133 = vpack.c.b16 %v819, %v817
    %v1134 = vpack.c.b16 %v822, %v820
    %v1135 = vpack.c.b16 %v823, %v821
    %v1136 = vpack.c.b16 %v826, %v824
    %v1137 = vpack.c.b16 %v827, %v825
    %v1138 = vpack.c.b16 %v830, %v828
    %v1139 = vpack.c.b16 %v831, %v829
    %v1140 = vpack.c.b16 %v834, %v832
    %v1141 = vpack.c.b16 %v835, %v833
    %v1142 = vpack.c.b16 %v838, %v836
    %v1143 = vpack.c.b16 %v839, %v837
    %v1144 = vpack.c.b16 %v842, %v840
    %v1145 = vpack.c.b16 %v843, %v841
    %v1146 = vpack.c.b16 %v846, %v844
    %v1147 = vpack.c.b16 %v847, %v845
    %v1148 = vpack.c.b16 %v850, %v848
    %v1149 = vpack.c.b16 %v851, %v849
    %v1150 = vpack.c.b16 %v854, %v852
    %v1151 = vpack.c.b16 %v855, %v853
    %v1152 = vpack.c.b16 %v858, %v856
    %v1153 = vpack.c.b16 %v859, %v857
    %v1154 = vpack.c.b16 %v862, %v860
    %v1155 = vpack.c.b16 %v863, %v861
    %v1156 = vpack.c.b16 %v866, %v864
    %v1157 = vpack.c.b16 %v867, %v865
    %v1158 = vpack.c.b16 %v870, %v868
    %v1159 = vpack.c.b16 %v871, %v869
    %v1160 = vpack.c.b16 %v874, %v872
    %v1161 = vpack.c.b16 %v875, %v873
    %v1162 = vpack.c.b16 %v878, %v876
    %v1163 = vpack.c.b16 %v879, %v877
    %v1164 = vpack.c.b16 %v882, %v880
    %v1165 = vpack.c.b16 %v883, %v881
    %v1166 = vpack.c.b16 %v886, %v884
    %v1167 = vpack.c.b16 %v887, %v885
    %v1168 = vpack.c.b16 %v890, %v888
    %v1169 = vpack.c.b16 %v891, %v889
    %v1170 = vpack.c.b16 %v894, %v892
    %v1171 = vpack.c.b16 %v895, %v893
    %v1172 = vpack.c.b16 %v898, %v896
    %v1173 = vpack.c.b16 %v899, %v897
    %v1174 = vpack.c.b16 %v902, %v900
    %v1175 = vpack.c.b16 %v903, %v901
    %v1176 = vpack.c.b16 %v906, %v904
    %v1177 = vpack.c.b16 %v907, %v905
    %v1178 = vpack.c.b16 %v910, %v908
    %v1179 = vpack.c.b16 %v911, %v909
    %v1180 = vpack.c.b16 %v914, %v912
    %v1181 = vpack.c.b16 %v915, %v913
    %v1182 = vpack.c.b16 %v918, %v916
    %v1183 = vpack.c.b16 %v919, %v917
    %v1184 = vpack.c.b16 %v922, %v920
    %v1185 = vpack.c.b16 %v923, %v921
    %v1186 = vpack.c.b16 %v926, %v924
    %v1187 = vpack.c.b16 %v927, %v925
    %v1188 = vpack.c.b16 %v930, %v928
    %v1189 = vpack.c.b16 %v931, %v929
    %v1190 = vpack.c.b16 %v934, %v932
    %v1191 = vpack.c.b16 %v935, %v933
    %v1192 = vpack.c.b16 %v938, %v936
    %v1193 = vpack.c.b16 %v939, %v937
    %v1194 = vpack.c.b16 %v942, %v940
    %v1195 = vpack.c.b16 %v943, %v941
    %v1196 = vpack.c.b16 %v946, %v944
    %v1197 = vpack.c.b16 %v947, %v945
    %v1198 = vpack.c.b16 %v950, %v948
    %v1199 = vpack.c.b16 %v951, %v949
    %v1200 = vpack.c.b16 %v954, %v952
    %v1201 = vpack.c.b16 %v955, %v953
    %v1202 = vpack.c.b16 %v958, %v956
    %v1203 = vpack.c.b16 %v959, %v957
    %v1204 = vpack.c.b16 %v962, %v960
    %v1205 = vpack.c.b16 %v963, %v961
    %v1206 = vpack.c.b16 %v966, %v964
    %v1207 = vpack.c.b16 %v967, %v965
    %v1208 = vpack.c.b16 %v970, %v968
    %v1209 = vpack.c.b16 %v971, %v969
    %v1210 = vpack.c.b16 %v974, %v972
    %v1211 = vpack.c.b16 %v975, %v973
    %v1212 = vpack.c.b16 %v978, %v976
    %v1213 = vpack.c.b16 %v979, %v977
    %v1214 = vpack.c.b16 %v982, %v980
    %v1215 = vpack.c.b16 %v983, %v981
    %v1216 = vpack.c.b16 %v986, %v984
    %v1217 = vpack.c.b16 %v987, %v985
    %v1218 = vpack.c.b16 %v990, %v988
    %v1219 = vpack.c.b16 %v991, %v989
    %v1220 = vpack.c.b16 %v994, %v992
    %v1221 = vpack.c.b16 %v995, %v993
    %v1222 = vpack.c.b16 %v998, %v996
    %v1223 = vpack.c.b16 %v999, %v997
    %v1224 = vpack.c.b16 %v1002, %v1000
    %v1225 = vpack.c.b16 %v1003, %v1001
    %v1226 = vpack.c.b16 %v1006, %v1004
    %v1227 = vpack.c.b16 %v1007, %v1005
    %v1228 = vpack.c.b16 %v1010, %v1008
    %v1229 = vpack.c.b16 %v1011, %v1009
    %v1230 = vpack.c.b16 %v1014, %v1012
    %v1231 = vpack.c.b16 %v1015, %v1013
    %v1232 = vpack.c.b16 %v1018, %v1016
    %v1233 = vpack.c.b16 %v1019, %v1017
    %v1234 = vpack.c.b16 %v1022, %v1020
    %v1235 = vpack.c.b16 %v1023, %v1021
    %v1236 = vpack.c.b16 %v1026, %v1024
    %v1237 = vpack.c.b16 %v1027, %v1025
    %v1238 = vpack.c.b16 %v1030, %v1028
    %v1239 = vpack.c.b16 %v1031, %v1029
    %v1240 = vpack.c.b16 %v1034, %v1032
    %v1241 = vpack.c.b16 %v1035, %v1033
    %v1242 = vpack.c.b16 %v1038, %v1036
    %v1243 = vpack.c.b16 %v1039, %v1037
    %v1244 = vpack.c.b16 %v1042, %v1040
    %v1245 = vpack.c.b16 %v1043, %v1041
    %v1246 = vpack.c.b16 %v1046, %v1044
    %v1247 = vpack.c.b16 %v1047, %v1045
    %vm1448 = vcmask 523264
    %v1450 = vsel %vm1448, %v235, 0
    %1452 = vmatprep.subr.bf16.mxu0 %v1049
    %1453 = vmatpush1.bf16.msra.mxu0 %v1048
    %1454 = vmatprep.subr.bf16.mxu0 %v1051
    %1455 = vmatpush1.bf16.msra.mxu0 %v1050
    %1456 = vmatprep.subr.bf16.mxu0 %v1053
    %1457 = vmatpush1.bf16.msra.mxu0 %v1052
    %1458 = vmatprep.subr.bf16.mxu0 %v1055
    %1459 = vmatpush1.bf16.msra.mxu0 %v1054
    %1460 = vmatprep.subr.bf16.mxu0 %v1057
    %1461 = vmatpush1.bf16.msra.mxu0 %v1056
    %1462 = vmatprep.subr.bf16.mxu0 %v1059
    %1463 = vmatpush1.bf16.msra.mxu0 %v1058
    %1464 = vmatprep.subr.bf16.mxu0 %v1061
    %1465 = vmatpush1.bf16.msra.mxu0 %v1060
    %1466 = vmatprep.subr.bf16.mxu0 %v1063
    %1467 = vmatpush1.bf16.msra.mxu0 %v1062
    %1468 = vmatprep.subr.bf16.mxu0 %v1065
    %1469 = vmatpush1.bf16.msra.mxu0 %v1064
    %1470 = vmatprep.subr.bf16.mxu0 %v1067
    %1471 = vmatpush1.bf16.msra.mxu0 %v1066
    %1472 = vmatprep.subr.bf16.mxu0 %v1069
    %1473 = vmatpush1.bf16.msra.mxu0 %v1068
    %1474 = vmatprep.subr.bf16.mxu0 %v1071
    %1475 = vmatpush1.bf16.msra.mxu0 %v1070
    %1476 = vmatprep.subr.bf16.mxu0 %v1073
    %1477 = vmatpush1.bf16.msra.mxu0 %v1072
    %1478 = vmatprep.subr.bf16.mxu0 %v1075
    %1479 = vmatpush1.bf16.msra.mxu0 %v1074
    %1480 = vmatprep.subr.bf16.mxu0 %v1077
    %1481 = vmatpush1.bf16.msra.mxu0 %v1076
    %1482 = vmatprep.subr.bf16.mxu0 %v1079
    %1483 = vmatpush1.bf16.msra.mxu0 %v1078
    %1484 = vmatprep.mubr.bf16.mxu0 %v224
    %1485 = vmatmul.mubr.bf16.gmra.mrb[0].mxu0 %v223
    %v1486 = vpop.f32.mrb[0].mxu0
    %v1487 = vadd.f32 %v441, %v1486
    %v1488 = vpop.f32.mrb[0].mxu0
    %v1489 = vadd.f32 %v445, %v1488
    %v1490 = vpop.f32.mrb[0].mxu0
    %v1491 = vpop.f32.mrb[0].mxu0
    %1492 = vdwg.mxu0
    %1493 = vmatprep.subr.bf16.mxu0 %v1081
    %1494 = vmatpush1.bf16.msra.mxu0 %v1080
    %1495 = vmatprep.subr.bf16.mxu0 %v1083
    %1496 = vmatpush1.bf16.msra.mxu0 %v1082
    %1497 = vmatprep.subr.bf16.mxu0 %v1085
    %1498 = vmatpush1.bf16.msra.mxu0 %v1084
    %1499 = vmatprep.subr.bf16.mxu0 %v1087
    %1500 = vmatpush1.bf16.msra.mxu0 %v1086
    %1501 = vmatprep.subr.bf16.mxu0 %v1089
    %1502 = vmatpush1.bf16.msra.mxu0 %v1088
    %1503 = vmatprep.subr.bf16.mxu0 %v1091
    %1504 = vmatpush1.bf16.msra.mxu0 %v1090
    %1505 = vmatprep.subr.bf16.mxu0 %v1093
    %1506 = vmatpush1.bf16.msra.mxu0 %v1092
    %1507 = vmatprep.subr.bf16.mxu0 %v1095
    %1508 = vmatpush1.bf16.msra.mxu0 %v1094
    %1509 = vmatprep.subr.bf16.mxu0 %v1097
    %1510 = vmatpush1.bf16.msra.mxu0 %v1096
    %1511 = vmatprep.subr.bf16.mxu0 %v1099
    %1512 = vmatpush1.bf16.msra.mxu0 %v1098
    %1513 = vmatprep.subr.bf16.mxu0 %v1101
    %1514 = vmatpush1.bf16.msra.mxu0 %v1100
    %1515 = vmatprep.subr.bf16.mxu0 %v1103
    %1516 = vmatpush1.bf16.msra.mxu0 %v1102
    %1517 = vmatprep.subr.bf16.mxu0 %v1105
    %1518 = vmatpush1.bf16.msra.mxu0 %v1104
    %1519 = vmatprep.subr.bf16.mxu0 %v1107
    %1520 = vmatpush1.bf16.msra.mxu0 %v1106
    %1521 = vmatprep.subr.bf16.mxu0 %v1109
    %1522 = vmatpush1.bf16.msra.mxu0 %v1108
    %1523 = vmatprep.subr.bf16.mxu0 %v1111
    %1524 = vmatpush1.bf16.msra.mxu0 %v1110
    %1525 = vmatprep.mubr.bf16.mxu0 %v226
    %1526 = vmatmul.mubr.bf16.gmra.mrb[0].mxu0 %v225
    %v1527 = vpop.f32.mrb[0].mxu0
    %v1528 = vadd.f32 %v1487, %v1527
    %v1529 = vpop.f32.mrb[0].mxu0
    %v1530 = vadd.f32 %v1489, %v1529
    %v1531 = vpop.f32.mrb[0].mxu0
    %v1532 = vpop.f32.mrb[0].mxu0
    %1533 = vdwg.mxu0
    %1534 = vmatprep.subr.bf16.mxu0 %v1113
    %1535 = vmatpush1.bf16.msra.mxu0 %v1112
    %1536 = vmatprep.subr.bf16.mxu0 %v1115
    %1537 = vmatpush1.bf16.msra.mxu0 %v1114
    %1538 = vmatprep.subr.bf16.mxu0 %v1117
    %1539 = vmatpush1.bf16.msra.mxu0 %v1116
    %1540 = vmatprep.subr.bf16.mxu0 %v1119
    %1541 = vmatpush1.bf16.msra.mxu0 %v1118
    %1542 = vmatprep.subr.bf16.mxu0 %v1121
    %1543 = vmatpush1.bf16.msra.mxu0 %v1120
    %1544 = vmatprep.subr.bf16.mxu0 %v1123
    %1545 = vmatpush1.bf16.msra.mxu0 %v1122
    %1546 = vmatprep.subr.bf16.mxu0 %v1125
    %1547 = vmatpush1.bf16.msra.mxu0 %v1124
    %1548 = vmatprep.subr.bf16.mxu0 %v1127
    %1549 = vmatpush1.bf16.msra.mxu0 %v1126
    %1550 = vmatprep.subr.bf16.mxu0 %v1129
    %1551 = vmatpush1.bf16.msra.mxu0 %v1128
    %1552 = vmatprep.subr.bf16.mxu0 %v1131
    %1553 = vmatpush1.bf16.msra.mxu0 %v1130
    %1554 = vmatprep.subr.bf16.mxu0 %v1133
    %1555 = vmatpush1.bf16.msra.mxu0 %v1132
    %1556 = vmatprep.subr.bf16.mxu0 %v1135
    %1557 = vmatpush1.bf16.msra.mxu0 %v1134
    %1558 = vmatprep.subr.bf16.mxu0 %v1137
    %1559 = vmatpush1.bf16.msra.mxu0 %v1136
    %1560 = vmatprep.subr.bf16.mxu0 %v1139
    %1561 = vmatpush1.bf16.msra.mxu0 %v1138
    %1562 = vmatprep.subr.bf16.mxu0 %v1141
    %1563 = vmatpush1.bf16.msra.mxu0 %v1140
    %1564 = vmatprep.subr.bf16.mxu0 %v1143
    %1565 = vmatpush1.bf16.msra.mxu0 %v1142
    %1566 = vmatprep.mubr.bf16.mxu0 %v228
    %1567 = vmatmul.mubr.bf16.gmra.mrb[0].mxu0 %v227
    %v1568 = vpop.f32.mrb[0].mxu0
    %v1569 = vadd.f32 %v1528, %v1568
    %v1570 = vpop.f32.mrb[0].mxu0
    %v1571 = vadd.f32 %v1530, %v1570
    %v1572 = vpop.f32.mrb[0].mxu0
    %v1573 = vpop.f32.mrb[0].mxu0
    %1574 = vdwg.mxu0
    %1575 = vmatprep.subr.bf16.mxu0 %v1145
    %1576 = vmatpush1.bf16.msra.mxu0 %v1144
    %1577 = vmatprep.subr.bf16.mxu0 %v1147
    %1578 = vmatpush1.bf16.msra.mxu0 %v1146
    %1579 = vmatprep.subr.bf16.mxu0 %v1149
    %1580 = vmatpush1.bf16.msra.mxu0 %v1148
    %1581 = vmatprep.subr.bf16.mxu0 %v1151
    %1582 = vmatpush1.bf16.msra.mxu0 %v1150
    %1583 = vmatprep.subr.bf16.mxu0 %v1153
    %1584 = vmatpush1.bf16.msra.mxu0 %v1152
    %1585 = vmatprep.subr.bf16.mxu0 %v1155
    %1586 = vmatpush1.bf16.msra.mxu0 %v1154
    %1587 = vmatprep.subr.bf16.mxu0 %v1157
    %1588 = vmatpush1.bf16.msra.mxu0 %v1156
    %1589 = vmatprep.subr.bf16.mxu0 %v1159
    %1590 = vmatpush1.bf16.msra.mxu0 %v1158
    %1591 = vmatprep.subr.bf16.mxu0 %v1161
    %1592 = vmatpush1.bf16.msra.mxu0 %v1160
    %1593 = vmatprep.subr.bf16.mxu0 %v1163
    %1594 = vmatpush1.bf16.msra.mxu0 %v1162
    %1595 = vmatprep.subr.bf16.mxu0 %v1165
    %1596 = vmatpush1.bf16.msra.mxu0 %v1164
    %1597 = vmatprep.subr.bf16.mxu0 %v1167
    %1598 = vmatpush1.bf16.msra.mxu0 %v1166
    %1599 = vmatprep.subr.bf16.mxu0 %v1169
    %1600 = vmatpush1.bf16.msra.mxu0 %v1168
    %1601 = vmatprep.subr.bf16.mxu0 %v1171
    %1602 = vmatpush1.bf16.msra.mxu0 %v1170
    %1603 = vmatprep.subr.bf16.mxu0 %v1173
    %1604 = vmatpush1.bf16.msra.mxu0 %v1172
    %1605 = vmatprep.subr.bf16.mxu0 %v1175
    %1606 = vmatpush1.bf16.msra.mxu0 %v1174
    %1607 = vmatprep.mubr.bf16.mxu0 %v230
    %1608 = vmatmul.mubr.bf16.gmra.mrb[0].mxu0 %v229
    %v1609 = vpop.f32.mrb[0].mxu0
    %v1610 = vadd.f32 %v1569, %v1609
    %v1611 = vpop.f32.mrb[0].mxu0
    %v1612 = vadd.f32 %v1571, %v1611
    %v1613 = vpop.f32.mrb[0].mxu0
    %v1614 = vpop.f32.mrb[0].mxu0
    %1615 = vdwg.mxu0
    %1616 = vmatprep.subr.bf16.mxu0 %v1177
    %1617 = vmatpush1.bf16.msra.mxu0 %v1176
    %1618 = vmatprep.subr.bf16.mxu0 %v1179
    %1619 = vmatpush1.bf16.msra.mxu0 %v1178
    %1620 = vmatprep.subr.bf16.mxu0 %v1181
    %1621 = vmatpush1.bf16.msra.mxu0 %v1180
    %1622 = vmatprep.subr.bf16.mxu0 %v1183
    %1623 = vmatpush1.bf16.msra.mxu0 %v1182
    %1624 = vmatprep.subr.bf16.mxu0 %v1185
    %1625 = vmatpush1.bf16.msra.mxu0 %v1184
    %1626 = vmatprep.subr.bf16.mxu0 %v1187
    %1627 = vmatpush1.bf16.msra.mxu0 %v1186
    %1628 = vmatprep.subr.bf16.mxu0 %v1189
    %1629 = vmatpush1.bf16.msra.mxu0 %v1188
    %1630 = vmatprep.subr.bf16.mxu0 %v1191
    %1631 = vmatpush1.bf16.msra.mxu0 %v1190
    %1632 = vmatprep.subr.bf16.mxu0 %v1193
    %1633 = vmatpush1.bf16.msra.mxu0 %v1192
    %1634 = vmatprep.subr.bf16.mxu0 %v1195
    %1635 = vmatpush1.bf16.msra.mxu0 %v1194
    %1636 = vmatprep.subr.bf16.mxu0 %v1197
    %1637 = vmatpush1.bf16.msra.mxu0 %v1196
    %1638 = vmatprep.subr.bf16.mxu0 %v1199
    %1639 = vmatpush1.bf16.msra.mxu0 %v1198
    %1640 = vmatprep.subr.bf16.mxu0 %v1201
    %1641 = vmatpush1.bf16.msra.mxu0 %v1200
    %1642 = vmatprep.subr.bf16.mxu0 %v1203
    %1643 = vmatpush1.bf16.msra.mxu0 %v1202
    %1644 = vmatprep.subr.bf16.mxu0 %v1205
    %1645 = vmatpush1.bf16.msra.mxu0 %v1204
    %1646 = vmatprep.subr.bf16.mxu0 %v1207
    %1647 = vmatpush1.bf16.msra.mxu0 %v1206
    %1648 = vmatprep.mubr.bf16.mxu0 %v232
    %1649 = vmatmul.mubr.bf16.gmra.mrb[0].mxu0 %v231
    %v1650 = vpop.f32.mrb[0].mxu0
    %v1651 = vadd.f32 %v1610, %v1650
    %v1652 = vpop.f32.mrb[0].mxu0
    %v1653 = vadd.f32 %v1612, %v1652
    %v1654 = vpop.f32.mrb[0].mxu0
    %v1655 = vpop.f32.mrb[0].mxu0
    %1656 = vdwg.mxu0
    %1657 = vmatprep.subr.bf16.mxu0 %v1209
    %1658 = vmatpush1.bf16.msra.mxu0 %v1208
    %1659 = vmatprep.subr.bf16.mxu0 %v1211
    %1660 = vmatpush1.bf16.msra.mxu0 %v1210
    %1661 = vmatprep.subr.bf16.mxu0 %v1213
    %1662 = vmatpush1.bf16.msra.mxu0 %v1212
    %1663 = vmatprep.subr.bf16.mxu0 %v1215
    %1664 = vmatpush1.bf16.msra.mxu0 %v1214
    %1665 = vmatprep.subr.bf16.mxu0 %v1217
    %1666 = vmatpush1.bf16.msra.mxu0 %v1216
    %1667 = vmatprep.subr.bf16.mxu0 %v1219
    %1668 = vmatpush1.bf16.msra.mxu0 %v1218
    %1669 = vmatprep.subr.bf16.mxu0 %v1221
    %1670 = vmatpush1.bf16.msra.mxu0 %v1220
    %1671 = vmatprep.subr.bf16.mxu0 %v1223
    %1672 = vmatpush1.bf16.msra.mxu0 %v1222
    %1673 = vmatprep.subr.bf16.mxu0 %v1225
    %1674 = vmatpush1.bf16.msra.mxu0 %v1224
    %1675 = vmatprep.subr.bf16.mxu0 %v1227
    %1676 = vmatpush1.bf16.msra.mxu0 %v1226
    %1677 = vmatprep.subr.bf16.mxu0 %v1229
    %1678 = vmatpush1.bf16.msra.mxu0 %v1228
    %1679 = vmatprep.subr.bf16.mxu0 %v1231
    %1680 = vmatpush1.bf16.msra.mxu0 %v1230
    %1681 = vmatprep.subr.bf16.mxu0 %v1233
    %1682 = vmatpush1.bf16.msra.mxu0 %v1232
    %1683 = vmatprep.subr.bf16.mxu0 %v1235
    %1684 = vmatpush1.bf16.msra.mxu0 %v1234
    %1685 = vmatprep.subr.bf16.mxu0 %v1237
    %1686 = vmatpush1.bf16.msra.mxu0 %v1236
    %1687 = vmatprep.subr.bf16.mxu0 %v1239
    %1688 = vmatpush1.bf16.msra.mxu0 %v1238
    %1689 = vmatprep.mubr.bf16.mxu0 %v234
    %1690 = vmatmul.mubr.bf16.gmra.mrb[0].mxu0 %v233
    %v1691 = vpop.f32.mrb[0].mxu0
    %v1692 = vadd.f32 %v1651, %v1691
    %v1693 = vpop.f32.mrb[0].mxu0
    %v1694 = vadd.f32 %v1653, %v1693
    %v1695 = vpop.f32.mrb[0].mxu0
    %v1696 = vpop.f32.mrb[0].mxu0
    %1697 = vdwg.mxu0
    %1698 = vmatprep.subr.bf16.mxu0 %v1241
    %1699 = vmatpush1.bf16.msra.mxu0 %v1240
    %1700 = vmatprep.subr.bf16.mxu0 %v1243
    %1701 = vmatpush1.bf16.msra.mxu0 %v1242
    %1702 = vmatprep.subr.bf16.mxu0 %v1245
    %1703 = vmatpush1.bf16.msra.mxu0 %v1244
    %1704 = vmatprep.subr.bf16.mxu0 %v1247
    %1705 = vmatpush1.bf16.msra.mxu0 %v1246
    %1706 = vmatprep.subr.bf16.mxu0 0
    %1707 = vmatpush1.bf16.msra.mxu0 0
    %1708 = vmatprep.subr.bf16.mxu0 0
    %1709 = vmatpush1.bf16.msra.mxu0 0
    %1710 = vmatprep.subr.bf16.mxu0 0
    %1711 = vmatpush1.bf16.msra.mxu0 0
    %1712 = vmatprep.subr.bf16.mxu0 0
    %1713 = vmatpush1.bf16.msra.mxu0 0
    %1714 = vmatprep.subr.bf16.mxu0 0
    %1715 = vmatpush1.bf16.msra.mxu0 0
    %1716 = vmatprep.subr.bf16.mxu0 0
    %1717 = vmatpush1.bf16.msra.mxu0 0
    %1718 = vmatprep.subr.bf16.mxu0 0
    %1719 = vmatpush1.bf16.msra.mxu0 0
    %1720 = vmatprep.subr.bf16.mxu0 0
    %1721 = vmatpush1.bf16.msra.mxu0 0
    %1722 = vmatprep.subr.bf16.mxu0 0
    %1723 = vmatpush1.bf16.msra.mxu0 0
    %1724 = vmatprep.subr.bf16.mxu0 0
    %1725 = vmatpush1.bf16.msra.mxu0 0
    %1726 = vmatprep.subr.bf16.mxu0 0
    %1727 = vmatpush1.bf16.msra.mxu0 0
    %1728 = vmatprep.subr.bf16.mxu0 0
    %1729 = vmatpush1.bf16.msra.mxu0 0
    %1730 = vmatprep.mubr.bf16.mxu0 0
    %1731 = vmatmul.mubr.bf16.gmra.mrb[0].mxu0 %v1450
    %v1732 = vpop.f32.mrb[0].mxu0
    %v1733 = vadd.f32 %v1692, %v1732
    %v1734 = vpop.f32.mrb[0].mxu0
    %v1735 = vadd.f32 %v1694, %v1734
    %v1736 = vpop.f32.mrb[0].mxu0
    %v1737 = vpop.f32.mrb[0].mxu0
    %1738 = vdwg.mxu0
    %vm1739 = vcmp.ge.f32.partialorder %v1733, 0.0
    %vm1740 = vcmp.ge.f32.partialorder %v1735, 0.0
    %v1741 = vmul.f32 %v1733, 0.01
    %v1742 = vmul.f32 %v1735, 0.01
    %v1743 = vsel %vm1739, %v1733, %v1741
    %v1744 = vsel %vm1740, %v1735, %v1742
    %v1745 = vpack.c.bf16 %v1743, %v1743
    %v1746 = vpack.c.bf16 %v1744, %v1744
    %v1747 = vld [vmem:[%s8] sm:$0xf]
    %v1748 = vld [vmem:[%s8 + $0x4] sm:$0xf]
    %v1749 = vld [vmem:[%s8 + $0x8] sm:$0xf]
    %v1750 = vld [vmem:[%s8 + $0xc] sm:$0xf]
    %v1751 = vld [vmem:[%s8 + $0x10] sm:$0xf]
    %v1752 = vld [vmem:[%s8 + $0x14] sm:$0xf]
    %v1753 = vld [vmem:[%s8 + $0x18] sm:$0xf]
    %v1754 = vld [vmem:[%s8 + $0x1c] sm:$0xf]
    %v1755 = vld [vmem:[%s8 + $0x20] sm:$0xf]
    %v1756 = vld [vmem:[%s8 + $0x24] sm:$0xf]
    %v1757 = vld [vmem:[%s8 + $0x28] sm:$0xf]
    %v1758 = vld [vmem:[%s8 + $0x2c] sm:$0xf]
    %v1759 = vld [vmem:[%s8 + $0x30] sm:$0xf]
    %v1760 = vld [vmem:[%s8 + $0x34] sm:$0xf]
    %v1761 = vld [vmem:[%s8 + $0x38] sm:$0xf]
    %v1762 = vld [vmem:[%s8 + $0x3c] sm:$0xf]
    %v1763 = vld [vmem:[%s8 + $0x40] sm:$0xf]
    %v1764 = vld [vmem:[%s8 + $0x44] sm:$0xf]
    %v1765 = vld [vmem:[%s8 + $0x48] sm:$0xf]
    %v1766 = vld [vmem:[%s8 + $0x4c] sm:$0xf]
    %v1767 = vld [vmem:[%s8 + $0x50] sm:$0xf]
    %v1768 = vld [vmem:[%s8 + $0x54] sm:$0xf]
    %v1769 = vld [vmem:[%s8 + $0x58] sm:$0xf]
    %v1770 = vld [vmem:[%s8 + $0x5c] sm:$0xf]
    %v1771 = vld [vmem:[%s8 + $0x60] sm:$0xf]
    %v1772 = vld [vmem:[%s8 + $0x64] sm:$0xf]
    %v1773 = vld [vmem:[%s8 + $0x68] sm:$0xf]
    %v1774 = vld [vmem:[%s8 + $0x6c] sm:$0xf]
    %v1775 = vld [vmem:[%s8 + $0x70] sm:$0xf]
    %v1776 = vld [vmem:[%s8 + $0x74] sm:$0xf]
    %v1777 = vld [vmem:[%s8 + $0x78] sm:$0xf]
    %v1778 = vld [vmem:[%s8 + $0x7c] sm:$0xf]
    %v1779 = vld [vmem:[%s9] sm:$0x1]
    %v1781 = vlaneseq
    %v1782 = vshrl.u32 %v1781, 7
    %v1783 = vsub.s32 0, %v1782
    %v1784 = vrot.slane %v1779, %v1783
    %v1818 = vunpack.c.l.b16 %v1747
    %v1819 = vunpack.c.l.b16 %v1748
    %v1820 = vunpack.c.l.b16 %v1749
    %v1821 = vunpack.c.l.b16 %v1750
    %v1822 = vunpack.c.l.b16 %v1751
    %v1823 = vunpack.c.l.b16 %v1752
    %v1824 = vunpack.c.l.b16 %v1753
    %v1825 = vunpack.c.l.b16 %v1754
    %v1826 = vunpack.c.l.b16 %v1755
    %v1827 = vunpack.c.l.b16 %v1756
    %v1828 = vunpack.c.l.b16 %v1757
    %v1829 = vunpack.c.l.b16 %v1758
    %v1830 = vunpack.c.l.b16 %v1759
    %v1831 = vunpack.c.l.b16 %v1760
    %v1832 = vunpack.c.l.b16 %v1761
    %v1833 = vunpack.c.l.b16 %v1762
    %v1834 = vunpack.c.l.b16 %v1763
    %v1835 = vunpack.c.l.b16 %v1764
    %v1836 = vunpack.c.l.b16 %v1765
    %v1837 = vunpack.c.l.b16 %v1766
    %v1838 = vunpack.c.l.b16 %v1767
    %v1839 = vunpack.c.l.b16 %v1768
    %v1840 = vunpack.c.l.b16 %v1769
    %v1841 = vunpack.c.l.b16 %v1770
    %v1842 = vunpack.c.l.b16 %v1771
    %v1843 = vunpack.c.l.b16 %v1772
    %v1844 = vunpack.c.l.b16 %v1773
    %v1845 = vunpack.c.l.b16 %v1774
    %v1846 = vunpack.c.l.b16 %v1775
    %v1847 = vunpack.c.l.b16 %v1776
    %v1848 = vunpack.c.l.b16 %v1777
    %v1849 = vunpack.c.l.b16 %v1778
    %v1850 = vpack.c.b16 %v1819, %v1818
    %v1851 = vpack.c.b16 %v1821, %v1820
    %v1852 = vpack.c.b16 %v1823, %v1822
    %v1853 = vpack.c.b16 %v1825, %v1824
    %v1854 = vpack.c.b16 %v1827, %v1826
    %v1855 = vpack.c.b16 %v1829, %v1828
    %v1856 = vpack.c.b16 %v1831, %v1830
    %v1857 = vpack.c.b16 %v1833, %v1832
    %v1858 = vpack.c.b16 %v1835, %v1834
    %v1859 = vpack.c.b16 %v1837, %v1836
    %v1860 = vpack.c.b16 %v1839, %v1838
    %v1861 = vpack.c.b16 %v1841, %v1840
    %v1862 = vpack.c.b16 %v1843, %v1842
    %v1863 = vpack.c.b16 %v1845, %v1844
    %v1864 = vpack.c.b16 %v1847, %v1846
    %v1865 = vpack.c.b16 %v1849, %v1848
    %1882 = vmatprep.subr.bf16.mxu0 0
    %1883 = vmatpush1.bf16.msra.mxu0 %v1850
    %1884 = vmatprep.subr.bf16.mxu0 0
    %1885 = vmatpush1.bf16.msra.mxu0 %v1851
    %1886 = vmatprep.subr.bf16.mxu0 0
    %1887 = vmatpush1.bf16.msra.mxu0 %v1852
    %1888 = vmatprep.subr.bf16.mxu0 0
    %1889 = vmatpush1.bf16.msra.mxu0 %v1853
    %1890 = vmatprep.subr.bf16.mxu0 0
    %1891 = vmatpush1.bf16.msra.mxu0 %v1854
    %1892 = vmatprep.subr.bf16.mxu0 0
    %1893 = vmatpush1.bf16.msra.mxu0 %v1855
    %1894 = vmatprep.subr.bf16.mxu0 0
    %1895 = vmatpush1.bf16.msra.mxu0 %v1856
    %1896 = vmatprep.subr.bf16.mxu0 0
    %1897 = vmatpush1.bf16.msra.mxu0 %v1857
    %1898 = vmatprep.subr.bf16.mxu0 0
    %1899 = vmatpush1.bf16.msra.mxu0 %v1858
    %1900 = vmatprep.subr.bf16.mxu0 0
    %1901 = vmatpush1.bf16.msra.mxu0 %v1859
    %1902 = vmatprep.subr.bf16.mxu0 0
    %1903 = vmatpush1.bf16.msra.mxu0 %v1860
    %1904 = vmatprep.subr.bf16.mxu0 0
    %1905 = vmatpush1.bf16.msra.mxu0 %v1861
    %1906 = vmatprep.subr.bf16.mxu0 0
    %1907 = vmatpush1.bf16.msra.mxu0 %v1862
    %1908 = vmatprep.subr.bf16.mxu0 0
    %1909 = vmatpush1.bf16.msra.mxu0 %v1863
    %1910 = vmatprep.subr.bf16.mxu0 0
    %1911 = vmatpush1.bf16.msra.mxu0 %v1864
    %1912 = vmatprep.subr.bf16.mxu0 0
    %1913 = vmatpush1.bf16.msra.mxu0 %v1865
    %1914 = vmatprep.mubr.bf16.mxu0 %v1746
    %1915 = vmatmul.mubr.bf16.gmra.mrb[0].mxu0 %v1745
    %v1916 = vpop.f32.mrb[0].mxu0
    %v1917 = vadd.f32 %v1784, %v1916
    %v1918 = vpop.f32.mrb[0].mxu0
    %v1919 = vpop.f32.mrb[0].mxu0
    %v1920 = vpop.f32.mrb[0].mxu0
    %1921 = vdwg.mxu0
    %vm1922 = vcmp.ge.f32.partialorder %v1917, 0.0
    %v1923 = vmul.f32 %v1917, 0.01
    %v1924 = vsel %vm1922, %v1917, %v1923
    %v1925 = vpack.c.bf16 %v1924, %v1924
    %v1926 = vld [vmem:[%s10] sm:$0xff]
    %v1927 = vld [vmem:[%s10 + $0x8] sm:$0xff]
    %v1928 = vld [vmem:[%s10 + $0x10] sm:$0xff]
    %v1929 = vld [vmem:[%s10 + $0x18] sm:$0xff]
    %v1930 = vld [vmem:[%s11] sm:$0x3]
    %v1932 = vlaneseq
    %v1933 = vshrl.u32 %v1932, 7
    %v1934 = vsub.s32 0, %v1933
    %v1935 = vrot.slane %v1930, %v1934
    %v1936 = vlaneseq
    %v1937 = vshrl.u32 %v1936, 7
    %v1938 = vsub.s32 1, %v1937
    %v1939 = vrot.slane %v1930, %v1938
    %v1946 = vunpack.c.l.b16 %v1926
    %v1947 = vunpack.c.h.b16 %v1926
    %v1948 = vunpack.c.l.b16 %v1927
    %v1949 = vunpack.c.h.b16 %v1927
    %v1950 = vunpack.c.l.b16 %v1928
    %v1951 = vunpack.c.h.b16 %v1928
    %v1952 = vunpack.c.l.b16 %v1929
    %v1953 = vunpack.c.h.b16 %v1929
    %v1954 = vpack.c.b16 %v1948, %v1946
    %v1955 = vpack.c.b16 %v1949, %v1947
    %v1956 = vpack.c.b16 %v1952, %v1950
    %v1957 = vpack.c.b16 %v1953, %v1951
    %vm1962 = vcmask 261120
    %v1964 = vsel %vm1962, %v1925, 0
    %1966 = vmatprep.subr.bf16.mxu0 %v1955
    %1967 = vmatpush1.bf16.msra.mxu0 %v1954
    %1968 = vmatprep.subr.bf16.mxu0 %v1957
    %1969 = vmatpush1.bf16.msra.mxu0 %v1956
    %1970 = vmatprep.subr.bf16.mxu0 0
    %1971 = vmatpush1.bf16.msra.mxu0 0
    %1972 = vmatprep.subr.bf16.mxu0 0
    %1973 = vmatpush1.bf16.msra.mxu0 0
    %1974 = vmatprep.subr.bf16.mxu0 0
    %1975 = vmatpush1.bf16.msra.mxu0 0
    %1976 = vmatprep.subr.bf16.mxu0 0
    %1977 = vmatpush1.bf16.msra.mxu0 0
    %1978 = vmatprep.subr.bf16.mxu0 0
    %1979 = vmatpush1.bf16.msra.mxu0 0
    %1980 = vmatprep.subr.bf16.mxu0 0
    %1981 = vmatpush1.bf16.msra.mxu0 0
    %1982 = vmatprep.subr.bf16.mxu0 0
    %1983 = vmatpush1.bf16.msra.mxu0 0
    %1984 = vmatprep.subr.bf16.mxu0 0
    %1985 = vmatpush1.bf16.msra.mxu0 0
    %1986 = vmatprep.subr.bf16.mxu0 0
    %1987 = vmatpush1.bf16.msra.mxu0 0
    %1988 = vmatprep.subr.bf16.mxu0 0
    %1989 = vmatpush1.bf16.msra.mxu0 0
    %1990 = vmatprep.subr.bf16.mxu0 0
    %1991 = vmatpush1.bf16.msra.mxu0 0
    %1992 = vmatprep.subr.bf16.mxu0 0
    %1993 = vmatpush1.bf16.msra.mxu0 0
    %1994 = vmatprep.subr.bf16.mxu0 0
    %1995 = vmatpush1.bf16.msra.mxu0 0
    %1996 = vmatprep.subr.bf16.mxu0 0
    %1997 = vmatpush1.bf16.msra.mxu0 0
    %1998 = vmatprep.mubr.bf16.mxu0 0
    %1999 = vmatmul.mubr.bf16.gmra.mrb[0].mxu0 %v1964
    %v2000 = vpop.f32.mrb[0].mxu0
    %v2001 = vadd.f32 %v1935, %v2000
    %v2002 = vpop.f32.mrb[0].mxu0
    %v2003 = vadd.f32 %v1939, %v2002
    %v2004 = vpop.f32.mrb[0].mxu0
    %v2005 = vpop.f32.mrb[0].mxu0
    %2006 = vdwg.mxu0
    %vm2007 = vcmp.ge.f32.partialorder %v2001, 0.0
    %vm2008 = vcmp.ge.f32.partialorder %v2003, 0.0
    %v2009 = vmul.f32 %v2001, 0.01
    %v2010 = vmul.f32 %v2003, 0.01
    %v2011 = vsel %vm2007, %v2001, %v2009
    %v2012 = vsel %vm2008, %v2003, %v2010
    %s2013 = sld [smem:[#allocation2]]
    %v2014 = vld [vmem:[%s1] sm:$0x3]
    %v2015 = vld [vmem:[%s3] sm:$0x1]
    %v2017 = vlaneseq
    %v2018 = vshrl.u32 %v2017, 7
    %v2019 = vsub.s32 0, %v2018
    %v2020 = vrot.slane %v2015, %v2019
    %v2022 = vsub.f32 %v2014, %v2020
    %v2023 = vld [vmem:[#allocation3] sm:$0x1]
    %v2024 = vstv %s2013
    %v2025 = vrcp.pop %v2024
    %v2026 = vmul.f32 %v2023, %v2025
    %v2027 = vrsqrt.pop %v2026
    %v2029 = vlaneseq
    %v2030 = vshrl.u32 %v2029, 7
    %v2031 = vsub.s32 0, %v2030
    %v2032 = vrot.slane %v2027, %v2031
    %v2034 = vmul.f32 %v2022, %v2032
    %v2035 = vmax.f32 %v2034, -5.0
    %v2036 = vmin.f32 %v2035, 5.0
    %v2037 = vpack.c.bf16 %v2011, %v2011
    %v2038 = vpack.c.bf16 %v2012, %v2012
    %v2039 = vld [vmem:[%s12] sm:$0xff]
    %v2040 = vld [vmem:[%s12 + $0x8] sm:$0xff]
    %v2041 = vld [vmem:[%s12 + $0x10] sm:$0xff]
    %v2042 = vld [vmem:[%s12 + $0x18] sm:$0xff]
    %v2043 = vld [vmem:[%s12 + $0x20] sm:$0xff]
    %v2044 = vld [vmem:[%s12 + $0x28] sm:$0xff]
    %v2045 = vld [vmem:[%s12 + $0x30] sm:$0xff]
    %v2046 = vld [vmem:[%s12 + $0x38] sm:$0xff]
    %v2047 = vld [vmem:[%s12 + $0x40] sm:$0xff]
    %v2048 = vld [vmem:[%s12 + $0x48] sm:$0xff]
    %v2049 = vld [vmem:[%s12 + $0x50] sm:$0xff]
    %v2050 = vld [vmem:[%s12 + $0x58] sm:$0xff]
    %v2051 = vld [vmem:[%s12 + $0x60] sm:$0xff]
    %v2052 = vld [vmem:[%s12 + $0x68] sm:$0xff]
    %v2053 = vld [vmem:[%s12 + $0x70] sm:$0xff]
    %v2054 = vld [vmem:[%s12 + $0x78] sm:$0xff]
    %v2055 = vld [vmem:[%s12 + $0x80] sm:$0xff]
    %v2056 = vld [vmem:[%s12 + $0x88] sm:$0xff]
    %v2057 = vld [vmem:[%s12 + $0x90] sm:$0xff]
    %v2058 = vld [vmem:[%s12 + $0x98] sm:$0xff]
    %v2059 = vld [vmem:[%s12 + $0xa0] sm:$0xff]
    %v2060 = vld [vmem:[%s12 + $0xa8] sm:$0xff]
    %v2061 = vld [vmem:[%s12 + $0xb0] sm:$0xff]
    %v2062 = vld [vmem:[%s12 + $0xb8] sm:$0xff]
    %v2063 = vld [vmem:[%s12 + $0xc0] sm:$0xff]
    %v2064 = vld [vmem:[%s12 + $0xc8] sm:$0xff]
    %v2065 = vld [vmem:[%s12 + $0xd0] sm:$0xff]
    %v2066 = vld [vmem:[%s12 + $0xd8] sm:$0xff]
    %v2067 = vld [vmem:[%s12 + $0xe0] sm:$0xff]
    %v2068 = vld [vmem:[%s12 + $0xe8] sm:$0xff]
    %v2069 = vld [vmem:[%s12 + $0xf0] sm:$0xff]
    %v2070 = vld [vmem:[%s12 + $0xf8] sm:$0xff]
    %v2071 = vpack.c.bf16 %v2036, %v2036
    %v2072 = vld [vmem:[%s13] sm:$0xff]
    %v2074 = vunpack.c.l.b16 %v2072
    %v2075 = vunpack.c.h.b16 %v2072
    %v2076 = vpack.c.b16 %v2074, %v2074
    %v2077 = vpack.c.b16 %v2075, %v2075
    %vm2078 = vcmask 64512
    %v2080 = vsel %vm2078, %v2071, 0
    %vm2082 = vcmask 1043456
    %v2084 = vsel %vm2082, %v2076, 0
    %v2087 = vsel %vm2082, %v2077, 0
    %2089 = vmatprep.subr.bf16.mxu0 %v2087
    %2090 = vmatpush1.bf16.msra.mxu0 %v2084
    %2091 = vmatprep.subr.bf16.mxu0 0
    %2092 = vmatpush1.bf16.msra.mxu0 0
    %2093 = vmatprep.subr.bf16.mxu0 0
    %2094 = vmatpush1.bf16.msra.mxu0 0
    %2095 = vmatprep.subr.bf16.mxu0 0
    %2096 = vmatpush1.bf16.msra.mxu0 0
    %2097 = vmatprep.subr.bf16.mxu0 0
    %2098 = vmatpush1.bf16.msra.mxu0 0
    %2099 = vmatprep.subr.bf16.mxu0 0
    %2100 = vmatpush1.bf16.msra.mxu0 0
    %2101 = vmatprep.subr.bf16.mxu0 0
    %2102 = vmatpush1.bf16.msra.mxu0 0
    %2103 = vmatprep.subr.bf16.mxu0 0
    %2104 = vmatpush1.bf16.msra.mxu0 0
    %2105 = vmatprep.subr.bf16.mxu0 0
    %2106 = vmatpush1.bf16.msra.mxu0 0
    %2107 = vmatprep.subr.bf16.mxu0 0
    %2108 = vmatpush1.bf16.msra.mxu0 0
    %2109 = vmatprep.subr.bf16.mxu0 0
    %2110 = vmatpush1.bf16.msra.mxu0 0
    %2111 = vmatprep.subr.bf16.mxu0 0
    %2112 = vmatpush1.bf16.msra.mxu0 0
    %2113 = vmatprep.subr.bf16.mxu0 0
    %2114 = vmatpush1.bf16.msra.mxu0 0
    %2115 = vmatprep.subr.bf16.mxu0 0
    %2116 = vmatpush1.bf16.msra.mxu0 0
    %2117 = vmatprep.subr.bf16.mxu0 0
    %2118 = vmatpush1.bf16.msra.mxu0 0
    %2119 = vmatprep.subr.bf16.mxu0 0
    %2120 = vmatpush1.bf16.msra.mxu0 0
    %2121 = vmatprep.mubr.bf16.mxu0 0
    %2122 = vmatmul.mubr.bf16.gmra.mrb[0].mxu0 %v2080
    %v2123 = vpop.f32.mrb[0].mxu0
    %v2124 = vadd.f32 0.0, %v2123
    %v2125 = vpop.f32.mrb[0].mxu0
    %v2126 = vadd.f32 0.0, %v2125
    %v2127 = vpop.f32.mrb[0].mxu0
    %v2128 = vpop.f32.mrb[0].mxu0
    %2129 = vdwg.mxu0
    %v2162 = vunpack.c.l.b16 %v2039
    %v2163 = vunpack.c.h.b16 %v2039
    %v2164 = vunpack.c.l.b16 %v2040
    %v2165 = vunpack.c.h.b16 %v2040
    %v2166 = vunpack.c.l.b16 %v2041
    %v2167 = vunpack.c.h.b16 %v2041
    %v2168 = vunpack.c.l.b16 %v2042
    %v2169 = vunpack.c.h.b16 %v2042
    %v2170 = vunpack.c.l.b16 %v2043
    %v2171 = vunpack.c.h.b16 %v2043
    %v2172 = vunpack.c.l.b16 %v2044
    %v2173 = vunpack.c.h.b16 %v2044
    %v2174 = vunpack.c.l.b16 %v2045
    %v2175 = vunpack.c.h.b16 %v2045
    %v2176 = vunpack.c.l.b16 %v2046
    %v2177 = vunpack.c.h.b16 %v2046
    %v2178 = vunpack.c.l.b16 %v2047
    %v2179 = vunpack.c.h.b16 %v2047
    %v2180 = vunpack.c.l.b16 %v2048
    %v2181 = vunpack.c.h.b16 %v2048
    %v2182 = vunpack.c.l.b16 %v2049
    %v2183 = vunpack.c.h.b16 %v2049
    %v2184 = vunpack.c.l.b16 %v2050
    %v2185 = vunpack.c.h.b16 %v2050
    %v2186 = vunpack.c.l.b16 %v2051
    %v2187 = vunpack.c.h.b16 %v2051
    %v2188 = vunpack.c.l.b16 %v2052
    %v2189 = vunpack.c.h.b16 %v2052
    %v2190 = vunpack.c.l.b16 %v2053
    %v2191 = vunpack.c.h.b16 %v2053
    %v2192 = vunpack.c.l.b16 %v2054
    %v2193 = vunpack.c.h.b16 %v2054
    %v2194 = vunpack.c.l.b16 %v2055
    %v2195 = vunpack.c.h.b16 %v2055
    %v2196 = vunpack.c.l.b16 %v2056
    %v2197 = vunpack.c.h.b16 %v2056
    %v2198 = vunpack.c.l.b16 %v2057
    %v2199 = vunpack.c.h.b16 %v2057
    %v2200 = vunpack.c.l.b16 %v2058
    %v2201 = vunpack.c.h.b16 %v2058
    %v2202 = vunpack.c.l.b16 %v2059
    %v2203 = vunpack.c.h.b16 %v2059
    %v2204 = vunpack.c.l.b16 %v2060
    %v2205 = vunpack.c.h.b16 %v2060
    %v2206 = vunpack.c.l.b16 %v2061
    %v2207 = vunpack.c.h.b16 %v2061
    %v2208 = vunpack.c.l.b16 %v2062
    %v2209 = vunpack.c.h.b16 %v2062
    %v2210 = vunpack.c.l.b16 %v2063
    %v2211 = vunpack.c.h.b16 %v2063
    %v2212 = vunpack.c.l.b16 %v2064
    %v2213 = vunpack.c.h.b16 %v2064
    %v2214 = vunpack.c.l.b16 %v2065
    %v2215 = vunpack.c.h.b16 %v2065
    %v2216 = vunpack.c.l.b16 %v2066
    %v2217 = vunpack.c.h.b16 %v2066
    %v2218 = vunpack.c.l.b16 %v2067
    %v2219 = vunpack.c.h.b16 %v2067
    %v2220 = vunpack.c.l.b16 %v2068
    %v2221 = vunpack.c.h.b16 %v2068
    %v2222 = vunpack.c.l.b16 %v2069
    %v2223 = vunpack.c.h.b16 %v2069
    %v2224 = vunpack.c.l.b16 %v2070
    %v2225 = vunpack.c.h.b16 %v2070
    %v2226 = vpack.c.b16 %v2164, %v2162
    %v2227 = vpack.c.b16 %v2165, %v2163
    %v2228 = vpack.c.b16 %v2168, %v2166
    %v2229 = vpack.c.b16 %v2169, %v2167
    %v2230 = vpack.c.b16 %v2172, %v2170
    %v2231 = vpack.c.b16 %v2173, %v2171
    %v2232 = vpack.c.b16 %v2176, %v2174
    %v2233 = vpack.c.b16 %v2177, %v2175
    %v2234 = vpack.c.b16 %v2180, %v2178
    %v2235 = vpack.c.b16 %v2181, %v2179
    %v2236 = vpack.c.b16 %v2184, %v2182
    %v2237 = vpack.c.b16 %v2185, %v2183
    %v2238 = vpack.c.b16 %v2188, %v2186
    %v2239 = vpack.c.b16 %v2189, %v2187
    %v2240 = vpack.c.b16 %v2192, %v2190
    %v2241 = vpack.c.b16 %v2193, %v2191
    %v2242 = vpack.c.b16 %v2196, %v2194
    %v2243 = vpack.c.b16 %v2197, %v2195
    %v2244 = vpack.c.b16 %v2200, %v2198
    %v2245 = vpack.c.b16 %v2201, %v2199
    %v2246 = vpack.c.b16 %v2204, %v2202
    %v2247 = vpack.c.b16 %v2205, %v2203
    %v2248 = vpack.c.b16 %v2208, %v2206
    %v2249 = vpack.c.b16 %v2209, %v2207
    %v2250 = vpack.c.b16 %v2212, %v2210
    %v2251 = vpack.c.b16 %v2213, %v2211
    %v2252 = vpack.c.b16 %v2216, %v2214
    %v2253 = vpack.c.b16 %v2217, %v2215
    %v2254 = vpack.c.b16 %v2220, %v2218
    %v2255 = vpack.c.b16 %v2221, %v2219
    %v2256 = vpack.c.b16 %v2224, %v2222
    %v2257 = vpack.c.b16 %v2225, %v2223
    %2290 = vmatprep.subr.bf16.mxu0 %v2227
    %2291 = vmatpush1.bf16.msra.mxu0 %v2226
    %2292 = vmatprep.subr.bf16.mxu0 %v2229
    %2293 = vmatpush1.bf16.msra.mxu0 %v2228
    %2294 = vmatprep.subr.bf16.mxu0 %v2231
    %2295 = vmatpush1.bf16.msra.mxu0 %v2230
    %2296 = vmatprep.subr.bf16.mxu0 %v2233
    %2297 = vmatpush1.bf16.msra.mxu0 %v2232
    %2298 = vmatprep.subr.bf16.mxu0 %v2235
    %2299 = vmatpush1.bf16.msra.mxu0 %v2234
    %2300 = vmatprep.subr.bf16.mxu0 %v2237
    %2301 = vmatpush1.bf16.msra.mxu0 %v2236
    %2302 = vmatprep.subr.bf16.mxu0 %v2239
    %2303 = vmatpush1.bf16.msra.mxu0 %v2238
    %2304 = vmatprep.subr.bf16.mxu0 %v2241
    %2305 = vmatpush1.bf16.msra.mxu0 %v2240
    %2306 = vmatprep.subr.bf16.mxu0 %v2243
    %2307 = vmatpush1.bf16.msra.mxu0 %v2242
    %2308 = vmatprep.subr.bf16.mxu0 %v2245
    %2309 = vmatpush1.bf16.msra.mxu0 %v2244
    %2310 = vmatprep.subr.bf16.mxu0 %v2247
    %2311 = vmatpush1.bf16.msra.mxu0 %v2246
    %2312 = vmatprep.subr.bf16.mxu0 %v2249
    %2313 = vmatpush1.bf16.msra.mxu0 %v2248
    %2314 = vmatprep.subr.bf16.mxu0 %v2251
    %2315 = vmatpush1.bf16.msra.mxu0 %v2250
    %2316 = vmatprep.subr.bf16.mxu0 %v2253
    %2317 = vmatpush1.bf16.msra.mxu0 %v2252
    %2318 = vmatprep.subr.bf16.mxu0 %v2255
    %2319 = vmatpush1.bf16.msra.mxu0 %v2254
    %2320 = vmatprep.subr.bf16.mxu0 %v2257
    %2321 = vmatpush1.bf16.msra.mxu0 %v2256
    %2322 = vmatprep.mubr.bf16.mxu0 %v2038
    %2323 = vmatmul.mubr.bf16.gmra.mrb[0].mxu0 %v2037
    %v2324 = vpop.f32.mrb[0].mxu0
    %v2325 = vadd.f32 %v2124, %v2324
    %v2326 = vpop.f32.mrb[0].mxu0
    %v2327 = vadd.f32 %v2126, %v2326
    %v2328 = vpop.f32.mrb[0].mxu0
    %v2329 = vpop.f32.mrb[0].mxu0
    %2330 = vdwg.mxu0
    %v2331 = vld [vmem:[#allocation6] sm:$0x3]
    %v2333 = vlaneseq
    %v2334 = vshrl.u32 %v2333, 7
    %v2335 = vsub.s32 0, %v2334
    %v2336 = vrot.slane %v2331, %v2335
    %v2337 = vlaneseq
    %v2338 = vshrl.u32 %v2337, 7
    %v2339 = vsub.s32 1, %v2338
    %v2340 = vrot.slane %v2331, %v2339
    %v2343 = vadd.f32 %v2325, %v2336
    %v2344 = vadd.f32 %v2327, %v2340
    %v2345 = vsub.f32 0.0, %v2343
    %v2346 = vsub.f32 0.0, %v2344
    %v2347 = vmul.f32 %v2345, 1.442695
    %v2348 = vpow.pop %v2347
    %v2349 = vmul.f32 %v2346, 1.442695
    %v2350 = vpow.pop %v2349
    %v2351 = vadd.f32 %v2348, 1.0
    %v2352 = vadd.f32 %v2350, 1.0
    %v2353 = vrcp.pop %v2351
    %v2354 = vrcp.pop %v2352
    %v2355 = vmul.f32 %v2343, %v2353
    %v2356 = vmul.f32 %v2344, %v2354
    %v2357 = vpack.c.bf16 %v2355, %v2355
    %v2358 = vpack.c.bf16 %v2356, %v2356
    %v2359 = vld [vmem:[%s15] sm:$0xff]
    %v2360 = vld [vmem:[%s15 + $0x8] sm:$0xff]
    %v2361 = vld [vmem:[%s15 + $0x10] sm:$0xff]
    %v2362 = vld [vmem:[%s15 + $0x18] sm:$0xff]
    %v2363 = vld [vmem:[%s15 + $0x20] sm:$0xff]
    %v2364 = vld [vmem:[%s15 + $0x28] sm:$0xff]
    %v2365 = vld [vmem:[%s15 + $0x30] sm:$0xff]
    %v2366 = vld [vmem:[%s15 + $0x38] sm:$0xff]
    %v2367 = vld [vmem:[%s15 + $0x40] sm:$0xff]
    %v2368 = vld [vmem:[%s15 + $0x48] sm:$0xff]
    %v2369 = vld [vmem:[%s15 + $0x50] sm:$0xff]
    %v2370 = vld [vmem:[%s15 + $0x58] sm:$0xff]
    %v2371 = vld [vmem:[%s15 + $0x60] sm:$0xff]
    %v2372 = vld [vmem:[%s15 + $0x68] sm:$0xff]
    %v2373 = vld [vmem:[%s15 + $0x70] sm:$0xff]
    %v2374 = vld [vmem:[%s15 + $0x78] sm:$0xff]
    %v2375 = vld [vmem:[%s15 + $0x80] sm:$0xff]
    %v2376 = vld [vmem:[%s15 + $0x88] sm:$0xff]
    %v2377 = vld [vmem:[%s15 + $0x90] sm:$0xff]
    %v2378 = vld [vmem:[%s15 + $0x98] sm:$0xff]
    %v2379 = vld [vmem:[%s15 + $0xa0] sm:$0xff]
    %v2380 = vld [vmem:[%s15 + $0xa8] sm:$0xff]
    %v2381 = vld [vmem:[%s15 + $0xb0] sm:$0xff]
    %v2382 = vld [vmem:[%s15 + $0xb8] sm:$0xff]
    %v2383 = vld [vmem:[%s15 + $0xc0] sm:$0xff]
    %v2384 = vld [vmem:[%s15 + $0xc8] sm:$0xff]
    %v2385 = vld [vmem:[%s15 + $0xd0] sm:$0xff]
    %v2386 = vld [vmem:[%s15 + $0xd8] sm:$0xff]
    %v2387 = vld [vmem:[%s15 + $0xe0] sm:$0xff]
    %v2388 = vld [vmem:[%s15 + $0xe8] sm:$0xff]
    %v2389 = vld [vmem:[%s15 + $0xf0] sm:$0xff]
    %v2390 = vld [vmem:[%s15 + $0xf8] sm:$0xff]
    %v2391 = vld [vmem:[#allocation8] sm:$0x3]
    %v2393 = vlaneseq
    %v2394 = vshrl.u32 %v2393, 7
    %v2395 = vsub.s32 0, %v2394
    %v2396 = vrot.slane %v2391, %v2395
    %v2397 = vlaneseq
    %v2398 = vshrl.u32 %v2397, 7
    %v2399 = vsub.s32 1, %v2398
    %v2400 = vrot.slane %v2391, %v2399
    %v2435 = vunpack.c.l.b16 %v2359
    %v2436 = vunpack.c.h.b16 %v2359
    %v2437 = vunpack.c.l.b16 %v2360
    %v2438 = vunpack.c.h.b16 %v2360
    %v2439 = vunpack.c.l.b16 %v2361
    %v2440 = vunpack.c.h.b16 %v2361
    %v2441 = vunpack.c.l.b16 %v2362
    %v2442 = vunpack.c.h.b16 %v2362
    %v2443 = vunpack.c.l.b16 %v2363
    %v2444 = vunpack.c.h.b16 %v2363
    %v2445 = vunpack.c.l.b16 %v2364
    %v2446 = vunpack.c.h.b16 %v2364
    %v2447 = vunpack.c.l.b16 %v2365
    %v2448 = vunpack.c.h.b16 %v2365
    %v2449 = vunpack.c.l.b16 %v2366
    %v2450 = vunpack.c.h.b16 %v2366
    %v2451 = vunpack.c.l.b16 %v2367
    %v2452 = vunpack.c.h.b16 %v2367
    %v2453 = vunpack.c.l.b16 %v2368
    %v2454 = vunpack.c.h.b16 %v2368
    %v2455 = vunpack.c.l.b16 %v2369
    %v2456 = vunpack.c.h.b16 %v2369
    %v2457 = vunpack.c.l.b16 %v2370
    %v2458 = vunpack.c.h.b16 %v2370
    %v2459 = vunpack.c.l.b16 %v2371
    %v2460 = vunpack.c.h.b16 %v2371
    %v2461 = vunpack.c.l.b16 %v2372
    %v2462 = vunpack.c.h.b16 %v2372
    %v2463 = vunpack.c.l.b16 %v2373
    %v2464 = vunpack.c.h.b16 %v2373
    %v2465 = vunpack.c.l.b16 %v2374
    %v2466 = vunpack.c.h.b16 %v2374
    %v2467 = vunpack.c.l.b16 %v2375
    %v2468 = vunpack.c.h.b16 %v2375
    %v2469 = vunpack.c.l.b16 %v2376
    %v2470 = vunpack.c.h.b16 %v2376
    %v2471 = vunpack.c.l.b16 %v2377
    %v2472 = vunpack.c.h.b16 %v2377
    %v2473 = vunpack.c.l.b16 %v2378
    %v2474 = vunpack.c.h.b16 %v2378
    %v2475 = vunpack.c.l.b16 %v2379
    %v2476 = vunpack.c.h.b16 %v2379
    %v2477 = vunpack.c.l.b16 %v2380
    %v2478 = vunpack.c.h.b16 %v2380
    %v2479 = vunpack.c.l.b16 %v2381
    %v2480 = vunpack.c.h.b16 %v2381
    %v2481 = vunpack.c.l.b16 %v2382
    %v2482 = vunpack.c.h.b16 %v2382
    %v2483 = vunpack.c.l.b16 %v2383
    %v2484 = vunpack.c.h.b16 %v2383
    %v2485 = vunpack.c.l.b16 %v2384
    %v2486 = vunpack.c.h.b16 %v2384
    %v2487 = vunpack.c.l.b16 %v2385
    %v2488 = vunpack.c.h.b16 %v2385
    %v2489 = vunpack.c.l.b16 %v2386
    %v2490 = vunpack.c.h.b16 %v2386
    %v2491 = vunpack.c.l.b16 %v2387
    %v2492 = vunpack.c.h.b16 %v2387
    %v2493 = vunpack.c.l.b16 %v2388
    %v2494 = vunpack.c.h.b16 %v2388
    %v2495 = vunpack.c.l.b16 %v2389
    %v2496 = vunpack.c.h.b16 %v2389
    %v2497 = vunpack.c.l.b16 %v2390
    %v2498 = vunpack.c.h.b16 %v2390
    %v2499 = vpack.c.b16 %v2437, %v2435
    %v2500 = vpack.c.b16 %v2438, %v2436
    %v2501 = vpack.c.b16 %v2441, %v2439
    %v2502 = vpack.c.b16 %v2442, %v2440
    %v2503 = vpack.c.b16 %v2445, %v2443
    %v2504 = vpack.c.b16 %v2446, %v2444
    %v2505 = vpack.c.b16 %v2449, %v2447
    %v2506 = vpack.c.b16 %v2450, %v2448
    %v2507 = vpack.c.b16 %v2453, %v2451
    %v2508 = vpack.c.b16 %v2454, %v2452
    %v2509 = vpack.c.b16 %v2457, %v2455
    %v2510 = vpack.c.b16 %v2458, %v2456
    %v2511 = vpack.c.b16 %v2461, %v2459
    %v2512 = vpack.c.b16 %v2462, %v2460
    %v2513 = vpack.c.b16 %v2465, %v2463
    %v2514 = vpack.c.b16 %v2466, %v2464
    %v2515 = vpack.c.b16 %v2469, %v2467
    %v2516 = vpack.c.b16 %v2470, %v2468
    %v2517 = vpack.c.b16 %v2473, %v2471
    %v2518 = vpack.c.b16 %v2474, %v2472
    %v2519 = vpack.c.b16 %v2477, %v2475
    %v2520 = vpack.c.b16 %v2478, %v2476
    %v2521 = vpack.c.b16 %v2481, %v2479
    %v2522 = vpack.c.b16 %v2482, %v2480
    %v2523 = vpack.c.b16 %v2485, %v2483
    %v2524 = vpack.c.b16 %v2486, %v2484
    %v2525 = vpack.c.b16 %v2489, %v2487
    %v2526 = vpack.c.b16 %v2490, %v2488
    %v2527 = vpack.c.b16 %v2493, %v2491
    %v2528 = vpack.c.b16 %v2494, %v2492
    %v2529 = vpack.c.b16 %v2497, %v2495
    %v2530 = vpack.c.b16 %v2498, %v2496
    %2563 = vmatprep.subr.bf16.mxu0 %v2500
    %2564 = vmatpush1.bf16.msra.mxu0 %v2499
    %2565 = vmatprep.subr.bf16.mxu0 %v2502
    %2566 = vmatpush1.bf16.msra.mxu0 %v2501
    %2567 = vmatprep.subr.bf16.mxu0 %v2504
    %2568 = vmatpush1.bf16.msra.mxu0 %v2503
    %2569 = vmatprep.subr.bf16.mxu0 %v2506
    %2570 = vmatpush1.bf16.msra.mxu0 %v2505
    %2571 = vmatprep.subr.bf16.mxu0 %v2508
    %2572 = vmatpush1.bf16.msra.mxu0 %v2507
    %2573 = vmatprep.subr.bf16.mxu0 %v2510
    %2574 = vmatpush1.bf16.msra.mxu0 %v2509
    %2575 = vmatprep.subr.bf16.mxu0 %v2512
    %2576 = vmatpush1.bf16.msra.mxu0 %v2511
    %2577 = vmatprep.subr.bf16.mxu0 %v2514
    %2578 = vmatpush1.bf16.msra.mxu0 %v2513
    %2579 = vmatprep.subr.bf16.mxu0 %v2516
    %2580 = vmatpush1.bf16.msra.mxu0 %v2515
    %2581 = vmatprep.subr.bf16.mxu0 %v2518
    %2582 = vmatpush1.bf16.msra.mxu0 %v2517
    %2583 = vmatprep.subr.bf16.mxu0 %v2520
    %2584 = vmatpush1.bf16.msra.mxu0 %v2519
    %2585 = vmatprep.subr.bf16.mxu0 %v2522
    %2586 = vmatpush1.bf16.msra.mxu0 %v2521
    %2587 = vmatprep.subr.bf16.mxu0 %v2524
    %2588 = vmatpush1.bf16.msra.mxu0 %v2523
    %2589 = vmatprep.subr.bf16.mxu0 %v2526
    %2590 = vmatpush1.bf16.msra.mxu0 %v2525
    %2591 = vmatprep.subr.bf16.mxu0 %v2528
    %2592 = vmatpush1.bf16.msra.mxu0 %v2527
    %2593 = vmatprep.subr.bf16.mxu0 %v2530
    %2594 = vmatpush1.bf16.msra.mxu0 %v2529
    %2595 = vmatprep.mubr.bf16.mxu0 %v2358
    %2596 = vmatmul.mubr.bf16.gmra.mrb[0].mxu0 %v2357
    %v2597 = vpop.f32.mrb[0].mxu0
    %v2598 = vadd.f32 %v2396, %v2597
    %v2599 = vpop.f32.mrb[0].mxu0
    %v2600 = vadd.f32 %v2400, %v2599
    %v2601 = vpop.f32.mrb[0].mxu0
    %v2602 = vpop.f32.mrb[0].mxu0
    %2603 = vdwg.mxu0
    %v2604 = vsub.f32 0.0, %v2598
    %v2605 = vsub.f32 0.0, %v2600
    %v2606 = vmul.f32 %v2604, 1.442695
    %v2607 = vpow.pop %v2606
    %v2608 = vmul.f32 %v2605, 1.442695
    %v2609 = vpow.pop %v2608
    %v2610 = vadd.f32 %v2607, 1.0
    %v2611 = vadd.f32 %v2609, 1.0
    %v2612 = vrcp.pop %v2610
    %v2613 = vrcp.pop %v2611
    %v2614 = vmul.f32 %v2598, %v2612
    %v2615 = vmul.f32 %v2600, %v2613
    %v2616 = vpack.c.bf16 %v2614, %v2614
    %v2617 = vpack.c.bf16 %v2615, %v2615
    %v2618 = vld [vmem:[%s17] sm:$0xff]
    %v2619 = vld [vmem:[%s17 + $0x8] sm:$0xff]
    %v2620 = vld [vmem:[%s17 + $0x10] sm:$0xff]
    %v2621 = vld [vmem:[%s17 + $0x18] sm:$0xff]
    %v2622 = vld [vmem:[%s17 + $0x20] sm:$0xff]
    %v2623 = vld [vmem:[%s17 + $0x28] sm:$0xff]
    %v2624 = vld [vmem:[%s17 + $0x30] sm:$0xff]
    %v2625 = vld [vmem:[%s17 + $0x38] sm:$0xff]
    %v2626 = vld [vmem:[%s17 + $0x40] sm:$0xff]
    %v2627 = vld [vmem:[%s17 + $0x48] sm:$0xff]
    %v2628 = vld [vmem:[%s17 + $0x50] sm:$0xff]
    %v2629 = vld [vmem:[%s17 + $0x58] sm:$0xff]
    %v2630 = vld [vmem:[%s17 + $0x60] sm:$0xff]
    %v2631 = vld [vmem:[%s17 + $0x68] sm:$0xff]
    %v2632 = vld [vmem:[%s17 + $0x70] sm:$0xff]
    %v2633 = vld [vmem:[%s17 + $0x78] sm:$0xff]
    %v2634 = vld [vmem:[%s17 + $0x80] sm:$0xff]
    %v2635 = vld [vmem:[%s17 + $0x88] sm:$0xff]
    %v2636 = vld [vmem:[%s17 + $0x90] sm:$0xff]
    %v2637 = vld [vmem:[%s17 + $0x98] sm:$0xff]
    %v2638 = vld [vmem:[%s17 + $0xa0] sm:$0xff]
    %v2639 = vld [vmem:[%s17 + $0xa8] sm:$0xff]
    %v2640 = vld [vmem:[%s17 + $0xb0] sm:$0xff]
    %v2641 = vld [vmem:[%s17 + $0xb8] sm:$0xff]
    %v2642 = vld [vmem:[%s17 + $0xc0] sm:$0xff]
    %v2643 = vld [vmem:[%s17 + $0xc8] sm:$0xff]
    %v2644 = vld [vmem:[%s17 + $0xd0] sm:$0xff]
    %v2645 = vld [vmem:[%s17 + $0xd8] sm:$0xff]
    %v2646 = vld [vmem:[%s17 + $0xe0] sm:$0xff]
    %v2647 = vld [vmem:[%s17 + $0xe8] sm:$0xff]
    %v2648 = vld [vmem:[%s17 + $0xf0] sm:$0xff]
    %v2649 = vld [vmem:[%s17 + $0xf8] sm:$0xff]
    %v2650 = vld [vmem:[#allocation9] sm:$0x3]
    %v2652 = vlaneseq
    %v2653 = vshrl.u32 %v2652, 7
    %v2654 = vsub.s32 0, %v2653
    %v2655 = vrot.slane %v2650, %v2654
    %v2656 = vlaneseq
    %v2657 = vshrl.u32 %v2656, 7
    %v2658 = vsub.s32 1, %v2657
    %v2659 = vrot.slane %v2650, %v2658
    %v2694 = vunpack.c.l.b16 %v2618
    %v2695 = vunpack.c.h.b16 %v2618
    %v2696 = vunpack.c.l.b16 %v2619
    %v2697 = vunpack.c.h.b16 %v2619
    %v2698 = vunpack.c.l.b16 %v2620
    %v2699 = vunpack.c.h.b16 %v2620
    %v2700 = vunpack.c.l.b16 %v2621
    %v2701 = vunpack.c.h.b16 %v2621
    %v2702 = vunpack.c.l.b16 %v2622
    %v2703 = vunpack.c.h.b16 %v2622
    %v2704 = vunpack.c.l.b16 %v2623
    %v2705 = vunpack.c.h.b16 %v2623
    %v2706 = vunpack.c.l.b16 %v2624
    %v2707 = vunpack.c.h.b16 %v2624
    %v2708 = vunpack.c.l.b16 %v2625
    %v2709 = vunpack.c.h.b16 %v2625
    %v2710 = vunpack.c.l.b16 %v2626
    %v2711 = vunpack.c.h.b16 %v2626
    %v2712 = vunpack.c.l.b16 %v2627
    %v2713 = vunpack.c.h.b16 %v2627
    %v2714 = vunpack.c.l.b16 %v2628
    %v2715 = vunpack.c.h.b16 %v2628
    %v2716 = vunpack.c.l.b16 %v2629
    %v2717 = vunpack.c.h.b16 %v2629
    %v2718 = vunpack.c.l.b16 %v2630
    %v2719 = vunpack.c.h.b16 %v2630
    %v2720 = vunpack.c.l.b16 %v2631
    %v2721 = vunpack.c.h.b16 %v2631
    %v2722 = vunpack.c.l.b16 %v2632
    %v2723 = vunpack.c.h.b16 %v2632
    %v2724 = vunpack.c.l.b16 %v2633
    %v2725 = vunpack.c.h.b16 %v2633
    %v2726 = vunpack.c.l.b16 %v2634
    %v2727 = vunpack.c.h.b16 %v2634
    %v2728 = vunpack.c.l.b16 %v2635
    %v2729 = vunpack.c.h.b16 %v2635
    %v2730 = vunpack.c.l.b16 %v2636
    %v2731 = vunpack.c.h.b16 %v2636
    %v2732 = vunpack.c.l.b16 %v2637
    %v2733 = vunpack.c.h.b16 %v2637
    %v2734 = vunpack.c.l.b16 %v2638
    %v2735 = vunpack.c.h.b16 %v2638
    %v2736 = vunpack.c.l.b16 %v2639
    %v2737 = vunpack.c.h.b16 %v2639
    %v2738 = vunpack.c.l.b16 %v2640
    %v2739 = vunpack.c.h.b16 %v2640
    %v2740 = vunpack.c.l.b16 %v2641
    %v2741 = vunpack.c.h.b16 %v2641
    %v2742 = vunpack.c.l.b16 %v2642
    %v2743 = vunpack.c.h.b16 %v2642
    %v2744 = vunpack.c.l.b16 %v2643
    %v2745 = vunpack.c.h.b16 %v2643
    %v2746 = vunpack.c.l.b16 %v2644
    %v2747 = vunpack.c.h.b16 %v2644
    %v2748 = vunpack.c.l.b16 %v2645
    %v2749 = vunpack.c.h.b16 %v2645
    %v2750 = vunpack.c.l.b16 %v2646
    %v2751 = vunpack.c.h.b16 %v2646
    %v2752 = vunpack.c.l.b16 %v2647
    %v2753 = vunpack.c.h.b16 %v2647
    %v2754 = vunpack.c.l.b16 %v2648
    %v2755 = vunpack.c.h.b16 %v2648
    %v2756 = vunpack.c.l.b16 %v2649
    %v2757 = vunpack.c.h.b16 %v2649
    %v2758 = vpack.c.b16 %v2696, %v2694
    %v2759 = vpack.c.b16 %v2697, %v2695
    %v2760 = vpack.c.b16 %v2700, %v2698
    %v2761 = vpack.c.b16 %v2701, %v2699
    %v2762 = vpack.c.b16 %v2704, %v2702
    %v2763 = vpack.c.b16 %v2705, %v2703
    %v2764 = vpack.c.b16 %v2708, %v2706
    %v2765 = vpack.c.b16 %v2709, %v2707
    %v2766 = vpack.c.b16 %v2712, %v2710
    %v2767 = vpack.c.b16 %v2713, %v2711
    %v2768 = vpack.c.b16 %v2716, %v2714
    %v2769 = vpack.c.b16 %v2717, %v2715
    %v2770 = vpack.c.b16 %v2720, %v2718
    %v2771 = vpack.c.b16 %v2721, %v2719
    %v2772 = vpack.c.b16 %v2724, %v2722
    %v2773 = vpack.c.b16 %v2725, %v2723
    %v2774 = vpack.c.b16 %v2728, %v2726
    %v2775 = vpack.c.b16 %v2729, %v2727
    %v2776 = vpack.c.b16 %v2732, %v2730
    %v2777 = vpack.c.b16 %v2733, %v2731
    %v2778 = vpack.c.b16 %v2736, %v2734
    %v2779 = vpack.c.b16 %v2737, %v2735
    %v2780 = vpack.c.b16 %v2740, %v2738
    %v2781 = vpack.c.b16 %v2741, %v2739
    %v2782 = vpack.c.b16 %v2744, %v2742
    %v2783 = vpack.c.b16 %v2745, %v2743
    %v2784 = vpack.c.b16 %v2748, %v2746
    %v2785 = vpack.c.b16 %v2749, %v2747
    %v2786 = vpack.c.b16 %v2752, %v2750
    %v2787 = vpack.c.b16 %v2753, %v2751
    %v2788 = vpack.c.b16 %v2756, %v2754
    %v2789 = vpack.c.b16 %v2757, %v2755
    %2822 = vmatprep.subr.bf16.mxu0 %v2759
    %2823 = vmatpush1.bf16.msra.mxu0 %v2758
    %2824 = vmatprep.subr.bf16.mxu0 %v2761
    %2825 = vmatpush1.bf16.msra.mxu0 %v2760
    %2826 = vmatprep.subr.bf16.mxu0 %v2763
    %2827 = vmatpush1.bf16.msra.mxu0 %v2762
    %2828 = vmatprep.subr.bf16.mxu0 %v2765
    %2829 = vmatpush1.bf16.msra.mxu0 %v2764
    %2830 = vmatprep.subr.bf16.mxu0 %v2767
    %2831 = vmatpush1.bf16.msra.mxu0 %v2766
    %2832 = vmatprep.subr.bf16.mxu0 %v2769
    %2833 = vmatpush1.bf16.msra.mxu0 %v2768
    %2834 = vmatprep.subr.bf16.mxu0 %v2771
    %2835 = vmatpush1.bf16.msra.mxu0 %v2770
    %2836 = vmatprep.subr.bf16.mxu0 %v2773
    %2837 = vmatpush1.bf16.msra.mxu0 %v2772
    %2838 = vmatprep.subr.bf16.mxu0 %v2775
    %2839 = vmatpush1.bf16.msra.mxu0 %v2774
    %2840 = vmatprep.subr.bf16.mxu0 %v2777
    %2841 = vmatpush1.bf16.msra.mxu0 %v2776
    %2842 = vmatprep.subr.bf16.mxu0 %v2779
    %2843 = vmatpush1.bf16.msra.mxu0 %v2778
    %2844 = vmatprep.subr.bf16.mxu0 %v2781
    %2845 = vmatpush1.bf16.msra.mxu0 %v2780
    %2846 = vmatprep.subr.bf16.mxu0 %v2783
    %2847 = vmatpush1.bf16.msra.mxu0 %v2782
    %2848 = vmatprep.subr.bf16.mxu0 %v2785
    %2849 = vmatpush1.bf16.msra.mxu0 %v2784
    %2850 = vmatprep.subr.bf16.mxu0 %v2787
    %2851 = vmatpush1.bf16.msra.mxu0 %v2786
    %2852 = vmatprep.subr.bf16.mxu0 %v2789
    %2853 = vmatpush1.bf16.msra.mxu0 %v2788
    %2854 = vmatprep.mubr.bf16.mxu0 %v2617
    %2855 = vmatmul.mubr.bf16.gmra.mrb[0].mxu0 %v2616
    %v2856 = vpop.f32.mrb[0].mxu0
    %v2857 = vadd.f32 %v2655, %v2856
    %v2858 = vpop.f32.mrb[0].mxu0
    %v2859 = vadd.f32 %v2659, %v2858
    %v2860 = vpop.f32.mrb[0].mxu0
    %v2861 = vpop.f32.mrb[0].mxu0
    %2862 = vdwg.mxu0
    %v2863 = vsub.f32 0.0, %v2857
    %v2864 = vsub.f32 0.0, %v2859
    %v2865 = vmul.f32 %v2863, 1.442695
    %v2866 = vpow.pop %v2865
    %v2867 = vmul.f32 %v2864, 1.442695
    %v2868 = vpow.pop %v2867
    %v2869 = vadd.f32 %v2866, 1.0
    %v2870 = vadd.f32 %v2868, 1.0
    %v2871 = vrcp.pop %v2869
    %v2872 = vrcp.pop %v2870
    %v2873 = vmul.f32 %v2857, %v2871
    %v2874 = vmul.f32 %v2859, %v2872
    %v2875 = vpack.c.bf16 %v2873, %v2873
    %v2876 = vpack.c.bf16 %v2874, %v2874
    %v2877 = vld [vmem:[%s19] sm:$0xf]
    %v2878 = vld [vmem:[%s19 + $0x4] sm:$0xf]
    %v2879 = vld [vmem:[%s19 + $0x8] sm:$0xf]
    %v2880 = vld [vmem:[%s19 + $0xc] sm:$0xf]
    %v2881 = vld [vmem:[%s19 + $0x10] sm:$0xf]
    %v2882 = vld [vmem:[%s19 + $0x14] sm:$0xf]
    %v2883 = vld [vmem:[%s19 + $0x18] sm:$0xf]
    %v2884 = vld [vmem:[%s19 + $0x1c] sm:$0xf]
    %v2885 = vld [vmem:[%s19 + $0x20] sm:$0xf]
    %v2886 = vld [vmem:[%s19 + $0x24] sm:$0xf]
    %v2887 = vld [vmem:[%s19 + $0x28] sm:$0xf]
    %v2888 = vld [vmem:[%s19 + $0x2c] sm:$0xf]
    %v2889 = vld [vmem:[%s19 + $0x30] sm:$0xf]
    %v2890 = vld [vmem:[%s19 + $0x34] sm:$0xf]
    %v2891 = vld [vmem:[%s19 + $0x38] sm:$0xf]
    %v2892 = vld [vmem:[%s19 + $0x3c] sm:$0xf]
    %v2893 = vld [vmem:[%s19 + $0x40] sm:$0xf]
    %v2894 = vld [vmem:[%s19 + $0x44] sm:$0xf]
    %v2895 = vld [vmem:[%s19 + $0x48] sm:$0xf]
    %v2896 = vld [vmem:[%s19 + $0x4c] sm:$0xf]
    %v2897 = vld [vmem:[%s19 + $0x50] sm:$0xf]
    %v2898 = vld [vmem:[%s19 + $0x54] sm:$0xf]
    %v2899 = vld [vmem:[%s19 + $0x58] sm:$0xf]
    %v2900 = vld [vmem:[%s19 + $0x5c] sm:$0xf]
    %v2901 = vld [vmem:[%s19 + $0x60] sm:$0xf]
    %v2902 = vld [vmem:[%s19 + $0x64] sm:$0xf]
    %v2903 = vld [vmem:[%s19 + $0x68] sm:$0xf]
    %v2904 = vld [vmem:[%s19 + $0x6c] sm:$0xf]
    %v2905 = vld [vmem:[%s19 + $0x70] sm:$0xf]
    %v2906 = vld [vmem:[%s19 + $0x74] sm:$0xf]
    %v2907 = vld [vmem:[%s19 + $0x78] sm:$0xf]
    %v2908 = vld [vmem:[%s19 + $0x7c] sm:$0xf]
    %v2909 = vld [vmem:[#allocation11] sm:$0x1]
    %v2911 = vlaneseq
    %v2912 = vshrl.u32 %v2911, 7
    %v2913 = vsub.s32 0, %v2912
    %v2914 = vrot.slane %v2909, %v2913
    %v2948 = vunpack.c.l.b16 %v2877
    %v2949 = vunpack.c.l.b16 %v2878
    %v2950 = vunpack.c.l.b16 %v2879
    %v2951 = vunpack.c.l.b16 %v2880
    %v2952 = vunpack.c.l.b16 %v2881
    %v2953 = vunpack.c.l.b16 %v2882
    %v2954 = vunpack.c.l.b16 %v2883
    %v2955 = vunpack.c.l.b16 %v2884
    %v2956 = vunpack.c.l.b16 %v2885
    %v2957 = vunpack.c.l.b16 %v2886
    %v2958 = vunpack.c.l.b16 %v2887
    %v2959 = vunpack.c.l.b16 %v2888
    %v2960 = vunpack.c.l.b16 %v2889
    %v2961 = vunpack.c.l.b16 %v2890
    %v2962 = vunpack.c.l.b16 %v2891
    %v2963 = vunpack.c.l.b16 %v2892
    %v2964 = vunpack.c.l.b16 %v2893
    %v2965 = vunpack.c.l.b16 %v2894
    %v2966 = vunpack.c.l.b16 %v2895
    %v2967 = vunpack.c.l.b16 %v2896
    %v2968 = vunpack.c.l.b16 %v2897
    %v2969 = vunpack.c.l.b16 %v2898
    %v2970 = vunpack.c.l.b16 %v2899
    %v2971 = vunpack.c.l.b16 %v2900
    %v2972 = vunpack.c.l.b16 %v2901
    %v2973 = vunpack.c.l.b16 %v2902
    %v2974 = vunpack.c.l.b16 %v2903
    %v2975 = vunpack.c.l.b16 %v2904
    %v2976 = vunpack.c.l.b16 %v2905
    %v2977 = vunpack.c.l.b16 %v2906
    %v2978 = vunpack.c.l.b16 %v2907
    %v2979 = vunpack.c.l.b16 %v2908
    %v2980 = vpack.c.b16 %v2949, %v2948
    %v2981 = vpack.c.b16 %v2951, %v2950
    %v2982 = vpack.c.b16 %v2953, %v2952
    %v2983 = vpack.c.b16 %v2955, %v2954
    %v2984 = vpack.c.b16 %v2957, %v2956
    %v2985 = vpack.c.b16 %v2959, %v2958
    %v2986 = vpack.c.b16 %v2961, %v2960
    %v2987 = vpack.c.b16 %v2963, %v2962
    %v2988 = vpack.c.b16 %v2965, %v2964
    %v2989 = vpack.c.b16 %v2967, %v2966
    %v2990 = vpack.c.b16 %v2969, %v2968
    %v2991 = vpack.c.b16 %v2971, %v2970
    %v2992 = vpack.c.b16 %v2973, %v2972
    %v2993 = vpack.c.b16 %v2975, %v2974
    %v2994 = vpack.c.b16 %v2977, %v2976
    %v2995 = vpack.c.b16 %v2979, %v2978
    %3012 = vmatprep.subr.bf16.mxu0 0
    %3013 = vmatpush1.bf16.msra.mxu0 %v2980
    %3014 = vmatprep.subr.bf16.mxu0 0
    %3015 = vmatpush1.bf16.msra.mxu0 %v2981
    %3016 = vmatprep.subr.bf16.mxu0 0
    %3017 = vmatpush1.bf16.msra.mxu0 %v2982
    %3018 = vmatprep.subr.bf16.mxu0 0
    %3019 = vmatpush1.bf16.msra.mxu0 %v2983
    %3020 = vmatprep.subr.bf16.mxu0 0
    %3021 = vmatpush1.bf16.msra.mxu0 %v2984
    %3022 = vmatprep.subr.bf16.mxu0 0
    %3023 = vmatpush1.bf16.msra.mxu0 %v2985
    %3024 = vmatprep.subr.bf16.mxu0 0
    %3025 = vmatpush1.bf16.msra.mxu0 %v2986
    %3026 = vmatprep.subr.bf16.mxu0 0
    %3027 = vmatpush1.bf16.msra.mxu0 %v2987
    %3028 = vmatprep.subr.bf16.mxu0 0
    %3029 = vmatpush1.bf16.msra.mxu0 %v2988
    %3030 = vmatprep.subr.bf16.mxu0 0
    %3031 = vmatpush1.bf16.msra.mxu0 %v2989
    %3032 = vmatprep.subr.bf16.mxu0 0
    %3033 = vmatpush1.bf16.msra.mxu0 %v2990
    %3034 = vmatprep.subr.bf16.mxu0 0
    %3035 = vmatpush1.bf16.msra.mxu0 %v2991
    %3036 = vmatprep.subr.bf16.mxu0 0
    %3037 = vmatpush1.bf16.msra.mxu0 %v2992
    %3038 = vmatprep.subr.bf16.mxu0 0
    %3039 = vmatpush1.bf16.msra.mxu0 %v2993
    %3040 = vmatprep.subr.bf16.mxu0 0
    %3041 = vmatpush1.bf16.msra.mxu0 %v2994
    %3042 = vmatprep.subr.bf16.mxu0 0
    %3043 = vmatpush1.bf16.msra.mxu0 %v2995
    %3044 = vmatprep.mubr.bf16.mxu0 %v2876
    %3045 = vmatmul.mubr.bf16.gmra.mrb[0].mxu0 %v2875
    %v3046 = vpop.f32.mrb[0].mxu0
    %v3047 = vadd.f32 %v2914, %v3046
    %v3048 = vpop.f32.mrb[0].mxu0
    %v3049 = vpop.f32.mrb[0].mxu0
    %v3050 = vpop.f32.mrb[0].mxu0
    %3051 = vdwg.mxu0
    %v3052 = vld [vmem:[#allocation12] sm:$0x1]
    %v3053 = vmul.f32 %v3052, 1.442695
    %v3054 = vpow.pop %v3053
    %v3055 = vld [vmem:[%s2] sm:$0x3]
    %v3057 = vlaneseq
    %v3058 = vshrl.u32 %v3057, 7
    %v3059 = vsub.s32 0, %v3058
    %v3060 = vrot.slane %v3054, %v3059
    %v3062 = vmul.f32 %v3060, %v3055
    %v3063 = vadd.f32 %v3047, %v3062
    %vm3064 = vcmask 17408
    %3065 = vst.msk [vmem:[#allocation14] sm:$0x3] %vm3064, %v3063
    // Predicated region
    $region114: #{actor_forward.1} parent=1 // pred_check
      _
    $region115: #{actor_forward.1} parent=1 // pred_check_branch
      %3067 = sbr.rel (0) target = $region117
    $region116: #{actor_forward.1} parent=1 // pred_region
      %s3069 = ssub.s32 32, 32
      %3070 = vsyncadd [#allocation5], %s3069
      %s3072 = sshll.u32 [#allocation14], 4
      %s3073 = int_to_ptr.vmem [resolvable:$true] %s3072
      %3075 = dma.vmem_to_hbm [thread:$0]  %s3073, 32, %s22, [#allocation5]
    $region117: #{actor_forward.1} parent=1 // pred_fallthru
      _
    // Predicated region
    $region118: #{actor_forward.1} parent=1 // pred_check
      _
    $region119: #{actor_forward.1} parent=1 // pred_check_branch
      %3077 = sbr.rel (0) target = $region121
    $region120: #{actor_forward.1} parent=1 // pred_region
      %3078 = dma.done [#allocation5], 32
    $region121: #{actor_forward.1} parent=1 // pred_fallthru
      _
    %3079 = vsyncpa [#allocation4], 1
    %3080 = vsyncpa [#allocation7], 1
    %3081 = vsyncpa [#allocation10], 1
    %3082 = vsyncpa [#allocation13], 1
    %3083 = vsyncpa [#allocation5], 1

</llo_original>
